<compile_context>
chip_gen: v7x
topology: tpu7x:2x2x1
jax: 0.10.0
libtpu: 0.0.40
codegen_flags: <defaults>
</compile_context>

<pallas_src>
import jax
import jax.numpy as jnp
from jax.experimental import pallas as pl
from jax.experimental.pallas import tpu as pltpu


# ----------------------------- hyper-parameters ------------------------------
BATCH = 2
SEQ_LEN = 8
INPUT_DIM = 4
HIDDEN_DIM = 32
OUT_DIM = 3
N_LAYERS = 2
IND_DIM = 8  # self.indicator_dim

LANES = 128
SUBLANES = 8
BATCH_PAD = 8  # pad batch to one full sublane group


def _round_up(n, m):
    return ((n + m - 1) // m) * m


def _slab_width(hidden_dim):
    # Common (zero-padded) lane width for every packed section.
    return max(LANES, _round_up(4 * hidden_dim, LANES))


# ------------------------------ parameter init -------------------------------
def init_params(key, input_dim, hidden_dim, out_dim, n_layers, seq_len, ind_dim):
    """Deterministic parameter init (uniform, PyTorch-like scale)."""
    params = {}
    k = 1.0 / jnp.sqrt(hidden_dim)
    lstm = []
    for layer in range(n_layers):
        d_in = input_dim if layer == 0 else hidden_dim
        key, k1, k2, k3, k4 = jax.random.split(key, 5)
        w_ih = jax.random.uniform(k1, (4 * hidden_dim, d_in), jnp.float32, -k, k)
        w_hh = jax.random.uniform(k2, (4 * hidden_dim, hidden_dim), jnp.float32, -k, k)
        b_ih = jax.random.uniform(k3, (4 * hidden_dim,), jnp.float32, -k, k)
        b_hh = jax.random.uniform(k4, (4 * hidden_dim,), jnp.float32, -k, k)
        lstm.append(dict(w_ih=w_ih, w_hh=w_hh, b_ih=b_ih, b_hh=b_hh))
    params["lstm"] = lstm

    deep_in = (hidden_dim + ind_dim) * seq_len
    kd = 1.0 / jnp.sqrt(deep_in)
    key, k1, k2 = jax.random.split(key, 3)
    params["deep_w"] = jax.random.uniform(k1, (hidden_dim, deep_in), jnp.float32, -kd, kd)
    params["deep_b"] = jax.random.uniform(k2, (hidden_dim,), jnp.float32, -kd, kd)

    kl = 1.0 / jnp.sqrt(hidden_dim)
    key, k1, k2 = jax.random.split(key, 3)
    params["lin_w"] = jax.random.uniform(k1, (out_dim, hidden_dim), jnp.float32, -kl, kl)
    params["lin_b"] = jax.random.uniform(k2, (out_dim,), jnp.float32, -kl, kl)
    return params


# ------------------------- host-side param fusion/packing --------------------
def pack_params(params, *, input_dim, hidden_dim, out_dim, n_layers, seq_len, ind_dim):
    """Fuse + pad + pack all model parameters into a single (rows, W) f32 slab.

    Returns (slab, layout) where layout maps section name -> (row_offset, used_rows).
    Offsets are static Python ints derived from shapes only.
    """
    H, T, ID, O = hidden_dim, seq_len, ind_dim, out_dim
    W = _slab_width(H)
    hi = jax.lax.Precision.HIGHEST  # keep the weight fusion at full f32 accuracy

    lin_wT = params["lin_w"].T                                  # (H, O)
    deep_wT = params["deep_w"].T                                # (T*(H+ID), H)
    # Fuse deep -> (dropout=identity) -> linear:  W_big = deep_w^T @ lin_w^T
    w_big = jnp.dot(deep_wT, lin_wT, precision=hi).reshape(T, H + ID, O)
    wf_h = w_big[:, :H, :].reshape(T * H, O)                    # per-timestep hidden blocks
    wf_ind = w_big[:, H:, :].sum(axis=0)                        # indicators repeat per step
    b_f = (jnp.dot(params["deep_b"], lin_wT, precision=hi)
           + params["lin_b"]).reshape(1, O)

    sections = []
    for l in range(n_layers):
        p = params["lstm"][l]
        sections.append((f"wih{l}", p["w_ih"].T))                             # (D_l, 4H)
        sections.append((f"whh{l}", p["w_hh"].T))                             # (H, 4H)
        sections.append((f"bias{l}", (p["b_ih"] + p["b_hh"]).reshape(1, -1)))  # (1, 4H)
    sections.append(("wfh", wf_h))                                            # (T*H, O)
    sections.append(("wfind", wf_ind))                                        # (ID, O)
    sections.append(("bf", b_f))                                              # (1, O)

    blocks, layout, off = [], {}, 0
    for name, arr in sections:
        arr = jnp.asarray(arr, jnp.float32)
        r, c = arr.shape
        rp = _round_up(r, SUBLANES)                  # every section starts 8-row aligned
        blocks.append(jnp.pad(arr, ((0, rp - r), (0, W - c))))
        layout[name] = (off, r)
        off += rp
    return jnp.concatenate(blocks, axis=0), layout


# --------------------------------- the kernel --------------------------------
def _make_kernel(layout, *, hidden_dim, n_layers, seq_len, width, batch_pad):
    H, T, BP, f32 = hidden_dim, seq_len, batch_pad, jnp.float32

    def sec(slab_ref, name):
        off, rows = layout[name]
        return slab_ref[off:off + rows, :].astype(f32)

    def kernel(x_ref, ind_ref, slab_ref, out_ref):
        x_cur = x_ref[...].astype(f32)              # (T*BP, D0), time-major rows
        ind = ind_ref[...].astype(f32)              # (BP, ind_dim)

        # Loop-invariant lane masks: lanes [2H, 3H) use tanh, the rest sigmoid.
        # sigmoid(z) == 0.5*(tanh(z/2)+1)  -> one EUP tanh per step for all 4 gates.
        lane = jax.lax.broadcasted_iota(jnp.int32, (BP, 4 * H), 1)
        is_g = jnp.logical_and(lane >= 2 * H, lane < 3 * H)
        pre_scale = jnp.where(is_g, jnp.float32(1.0), jnp.float32(0.5))

        h_cat = None
        for l in range(n_layers):
            wih = sec(slab_ref, f"wih{l}")          # (D_l, 4H)  (lane padding is zero)
            whh = sec(slab_ref, f"whh{l}")          # (H, 4H)
            bias = sec(slab_ref, f"bias{l}")        # (1, 4H)

            # Hoisted input matmul for the whole sequence (off the recurrence path).
            xg = jnp.dot(x_cur, wih, preferred_element_type=f32) + bias      # (T*BP, 4H)

            h = jnp.zeros((BP, H), f32)
            c = jnp.zeros((BP, H), f32)
            hs = []
            for t in range(T):
                # Whole-vreg (BP=8 sublanes, 4H=128 lanes) slice of the hoisted gates.
                z = xg[t * BP:(t + 1) * BP, :]
                if t > 0:
                    # Single fused 128-lane hidden matmul (was 4 per-gate matmuls).
                    z = z + jnp.dot(h, whh, preferred_element_type=f32)
                tt = jnp.tanh(pre_scale * z)
                act = jnp.where(is_g, tt, 0.5 * tt + 0.5)                    # (BP, 4H)
                i_g = act[:, 0 * H:1 * H]
                f_g = act[:, 1 * H:2 * H]
                g_g = act[:, 2 * H:3 * H]
                o_g = act[:, 3 * H:4 * H]
                c = f_g * c + i_g * g_g
                h = o_g * jnp.tanh(c)
                hs.append(h)

            if l < n_layers - 1:
                x_cur = jnp.concatenate(hs, axis=0)   # (T*BP, H), time-major -> next layer
            else:
                h_cat = jnp.concatenate(hs, axis=1)   # (BP, T*H), epilogue operand

        # Epilogue (off the serial chain): fused deep+dropout(identity)+linear.
        wfh = sec(slab_ref, "wfh")                                            # (T*H, W)
        pred = jnp.dot(h_cat, wfh, preferred_element_type=f32)               # (BP, W)
        pred = pred + jnp.dot(ind, sec(slab_ref, "wfind"), preferred_element_type=f32)
        pred = pred + sec(slab_ref, "bf")
        out_ref[...] = pred.astype(out_ref.dtype)

    return kernel


def make_forward(layout, *, hidden_dim, out_dim, n_layers, seq_len, batch_pad=BATCH_PAD):
    width = _slab_width(hidden_dim)
    kernel = _make_kernel(layout, hidden_dim=hidden_dim, n_layers=n_layers,
                          seq_len=seq_len, width=width, batch_pad=batch_pad)

    @jax.jit
    def forward(in_seq, indicators, slab):
        B, T, D = in_seq.shape
        assert B <= batch_pad
        # Time-major (T*BP, D) layout with zero-padded batch rows: every per-timestep
        # slice in-kernel is a full 8-sublane group.
        x = jnp.transpose(in_seq.astype(jnp.float32), (1, 0, 2))        # (T, B, D)
        x = jnp.pad(x, ((0, 0), (0, batch_pad - B), (0, 0))).reshape(T * batch_pad, D)
        ind = jnp.pad(indicators.astype(jnp.float32), ((0, batch_pad - B), (0, 0)))
        out = pl.pallas_call(
            kernel,
            out_shape=jax.ShapeDtypeStruct((batch_pad, width), jnp.float32),
            in_specs=[pl.BlockSpec(memory_space=pltpu.MemorySpace.VMEM)] * 3,
            out_specs=pl.BlockSpec(memory_space=pltpu.MemorySpace.VMEM),
        )(x, ind, slab)
        return out[:B, :out_dim]

    return forward


# --------------------------- pure-JAX reference -----------------------------
def reference_forward(in_seq, indicators, params, *, n_layers, hidden_dim):
    B, T, _ = in_seq.shape
    H = hidden_dim
    x = in_seq.astype(jnp.float32)
    for layer in range(n_layers):
        p = params["lstm"][layer]
        w_ih_T = p["w_ih"].T
        w_hh_T = p["w_hh"].T
        b = p["b_ih"] + p["b_hh"]
        h = jnp.zeros((B, H), jnp.float32)
        c = jnp.zeros((B, H), jnp.float32)
        outs = []
        for t in range(T):
            gates = x[:, t, :] @ w_ih_T + h @ w_hh_T + b
            i_g = jax.nn.sigmoid(gates[:, 0 * H:1 * H])
            f_g = jax.nn.sigmoid(gates[:, 1 * H:2 * H])
            g_g = jnp.tanh(gates[:, 2 * H:3 * H])
            o_g = jax.nn.sigmoid(gates[:, 3 * H:4 * H])
            c = f_g * c + i_g * g_g
            h = o_g * jnp.tanh(c)
            outs.append(h)
        x = jnp.stack(outs, axis=1)
    ind = jnp.broadcast_to(indicators[:, None, :], (B, T, indicators.shape[-1]))
    out = jnp.concatenate([x, ind], axis=2).reshape(B, -1)
    deep = out @ params["deep_w"].T + params["deep_b"]
    return deep @ params["lin_w"].T + params["lin_b"]


if __name__ == "__main__":
    key = jax.random.PRNGKey(0)
    key, k_x, k_ind, k_p = jax.random.split(key, 4)

    in_seq = jax.random.normal(k_x, (BATCH, SEQ_LEN, INPUT_DIM), jnp.float32)
    indicators = jax.random.normal(k_ind, (BATCH, IND_DIM), jnp.float32)
    params = init_params(k_p, INPUT_DIM, HIDDEN_DIM, OUT_DIM, N_LAYERS, SEQ_LEN, IND_DIM)

    slab, layout = pack_params(params, input_dim=INPUT_DIM, hidden_dim=HIDDEN_DIM,
                               out_dim=OUT_DIM, n_layers=N_LAYERS, seq_len=SEQ_LEN,
                               ind_dim=IND_DIM)
    forward = make_forward(layout, hidden_dim=HIDDEN_DIM, out_dim=OUT_DIM,
                           n_layers=N_LAYERS, seq_len=SEQ_LEN)

    out = forward(in_seq, indicators, slab)
    out = jax.block_until_ready(out)

    ref = reference_forward(in_seq, indicators, params,
                            n_layers=N_LAYERS, hidden_dim=HIDDEN_DIM)
    assert out.shape == (BATCH, OUT_DIM), out.shape
    assert jnp.allclose(out, ref, atol=1e-4, rtol=1e-4), (out, ref)

    print("KERNEL_OK")
</pallas_src>

<mosaic_0001>
module attributes {stable_mosaic.version = 11 : i64} {
  func.func @kernel(%arg0: memref<64x4xf32, #tpu.memory_space<vmem>>, %arg1: memref<8x8xf32, #tpu.memory_space<vmem>>, %arg2: memref<392x128xf32, #tpu.memory_space<vmem>>, %arg3: memref<8x128xf32, #tpu.memory_space<vmem>>) attributes {dimension_semantics = [], scalar_prefetch = 0 : i64, scratch_operands = 0 : i64, tpu.core_type = #tpu.core_type<tc>} {
    %c0 = arith.constant 0 : index
    %c0_0 = arith.constant 0 : index
    %0 = vector.load %arg0[%c0, %c0_0] : memref<64x4xf32, #tpu.memory_space<vmem>>, vector<64x4xf32>
    %c0_1 = arith.constant 0 : index
    %c0_2 = arith.constant 0 : index
    %1 = vector.load %arg1[%c0_1, %c0_2] : memref<8x8xf32, #tpu.memory_space<vmem>>, vector<8x8xf32>
    %2 = tpu.iota {dimensions = array<i32: 1>} : vector<8x128xi32>
    %c64_i32 = arith.constant 64 : i32
    %3 = vector.broadcast %c64_i32 : i32 to vector<8x128xi32>
    %4 = arith.cmpi sge, %2, %3 : vector<8x128xi32>
    %c96_i32 = arith.constant 96 : i32
    %5 = vector.broadcast %c96_i32 : i32 to vector<8x128xi32>
    %6 = arith.cmpi slt, %2, %5 : vector<8x128xi32>
    %7 = arith.andi %4, %6 : vector<8x128xi1>
    %cst = arith.constant 1.000000e+00 : f32
    %cst_3 = arith.constant 5.000000e-01 : f32
    %8 = vector.broadcast %cst : f32 to vector<8x128xf32>
    %9 = vector.broadcast %cst_3 : f32 to vector<8x128xf32>
    %10 = arith.select %7, %8, %9 : vector<8x128xi1>, vector<8x128xf32>
    %c0_4 = arith.constant 0 : index
    %c0_5 = arith.constant 0 : index
    %11 = vector.load %arg2[%c0_4, %c0_5] : memref<392x128xf32, #tpu.memory_space<vmem>>, vector<4x128xf32>
    %c8 = arith.constant 8 : index
    %c0_6 = arith.constant 0 : index
    %12 = vector.load %arg2[%c8, %c0_6] : memref<392x128xf32, #tpu.memory_space<vmem>>, vector<32x128xf32>
    %c40 = arith.constant 40 : index
    %c0_7 = arith.constant 0 : index
    %13 = vector.load %arg2[%c40, %c0_7] : memref<392x128xf32, #tpu.memory_space<vmem>>, vector<1x128xf32>
    %cst_8 = arith.constant dense<0.000000e+00> : vector<64x128xf32>
    %14 = tpu.matmul %0, %11, %cst_8 {dimension_numbers = #tpu.dot_dimension_numbers<[1], [0], [0], [1], [0, 0, 1, 1], [], []>} : vector<64x4xf32>, vector<4x128xf32>, vector<64x128xf32> -> vector<64x128xf32>
    %15 = vector.broadcast %13 : vector<1x128xf32> to vector<64x128xf32>
    %16 = arith.addf %14, %15 : vector<64x128xf32>
    %cst_9 = arith.constant 0.000000e+00 : f32
    %17 = vector.broadcast %cst_9 : f32 to vector<8x32xf32>
    %18 = vector.extract_strided_slice %16 {offsets = [0, 0], sizes = [8, 128], strides = [1, 1]} : vector<64x128xf32> to vector<8x128xf32>
    %19 = arith.mulf %10, %18 : vector<8x128xf32>
    %20 = math.tanh %19 : vector<8x128xf32>
    %cst_10 = arith.constant 5.000000e-01 : f32
    %21 = vector.broadcast %cst_10 : f32 to vector<8x128xf32>
    %22 = arith.mulf %21, %20 : vector<8x128xf32>
    %cst_11 = arith.constant 5.000000e-01 : f32
    %23 = vector.broadcast %cst_11 : f32 to vector<8x128xf32>
    %24 = arith.addf %22, %23 : vector<8x128xf32>
    %25 = arith.select %7, %20, %24 : vector<8x128xi1>, vector<8x128xf32>
    %26 = vector.extract_strided_slice %25 {offsets = [0, 0], sizes = [8, 32], strides = [1, 1]} : vector<8x128xf32> to vector<8x32xf32>
    %27 = vector.extract_strided_slice %25 {offsets = [0, 32], sizes = [8, 32], strides = [1, 1]} : vector<8x128xf32> to vector<8x32xf32>
    %28 = vector.extract_strided_slice %25 {offsets = [0, 64], sizes = [8, 32], strides = [1, 1]} : vector<8x128xf32> to vector<8x32xf32>
    %29 = vector.extract_strided_slice %25 {offsets = [0, 96], sizes = [8, 32], strides = [1, 1]} : vector<8x128xf32> to vector<8x32xf32>
    %30 = arith.mulf %27, %17 : vector<8x32xf32>
    %31 = arith.mulf %26, %28 : vector<8x32xf32>
    %32 = arith.addf %30, %31 : vector<8x32xf32>
    %33 = math.tanh %32 : vector<8x32xf32>
    %34 = arith.mulf %29, %33 : vector<8x32xf32>
    %35 = vector.extract_strided_slice %16 {offsets = [8, 0], sizes = [8, 128], strides = [1, 1]} : vector<64x128xf32> to vector<8x128xf32>
    %cst_12 = arith.constant dense<0.000000e+00> : vector<8x128xf32>
    %36 = tpu.matmul %34, %12, %cst_12 {dimension_numbers = #tpu.dot_dimension_numbers<[1], [0], [0], [1], [0, 0, 1, 1], [], []>} : vector<8x32xf32>, vector<32x128xf32>, vector<8x128xf32> -> vector<8x128xf32>
    %37 = arith.addf %35, %36 : vector<8x128xf32>
    %38 = arith.mulf %10, %37 : vector<8x128xf32>
    %39 = math.tanh %38 : vector<8x128xf32>
    %cst_13 = arith.constant 5.000000e-01 : f32
    %40 = vector.broadcast %cst_13 : f32 to vector<8x128xf32>
    %41 = arith.mulf %40, %39 : vector<8x128xf32>
    %cst_14 = arith.constant 5.000000e-01 : f32
    %42 = vector.broadcast %cst_14 : f32 to vector<8x128xf32>
    %43 = arith.addf %41, %42 : vector<8x128xf32>
    %44 = arith.select %7, %39, %43 : vector<8x128xi1>, vector<8x128xf32>
    %45 = vector.extract_strided_slice %44 {offsets = [0, 0], sizes = [8, 32], strides = [1, 1]} : vector<8x128xf32> to vector<8x32xf32>
    %46 = vector.extract_strided_slice %44 {offsets = [0, 32], sizes = [8, 32], strides = [1, 1]} : vector<8x128xf32> to vector<8x32xf32>
    %47 = vector.extract_strided_slice %44 {offsets = [0, 64], sizes = [8, 32], strides = [1, 1]} : vector<8x128xf32> to vector<8x32xf32>
    %48 = vector.extract_strided_slice %44 {offsets = [0, 96], sizes = [8, 32], strides = [1, 1]} : vector<8x128xf32> to vector<8x32xf32>
    %49 = arith.mulf %46, %32 : vector<8x32xf32>
    %50 = arith.mulf %45, %47 : vector<8x32xf32>
    %51 = arith.addf %49, %50 : vector<8x32xf32>
    %52 = math.tanh %51 : vector<8x32xf32>
    %53 = arith.mulf %48, %52 : vector<8x32xf32>
    %54 = vector.extract_strided_slice %16 {offsets = [16, 0], sizes = [8, 128], strides = [1, 1]} : vector<64x128xf32> to vector<8x128xf32>
    %cst_15 = arith.constant dense<0.000000e+00> : vector<8x128xf32>
    %55 = tpu.matmul %53, %12, %cst_15 {dimension_numbers = #tpu.dot_dimension_numbers<[1], [0], [0], [1], [0, 0, 1, 1], [], []>} : vector<8x32xf32>, vector<32x128xf32>, vector<8x128xf32> -> vector<8x128xf32>
    %56 = arith.addf %54, %55 : vector<8x128xf32>
    %57 = arith.mulf %10, %56 : vector<8x128xf32>
    %58 = math.tanh %57 : vector<8x128xf32>
    %cst_16 = arith.constant 5.000000e-01 : f32
    %59 = vector.broadcast %cst_16 : f32 to vector<8x128xf32>
    %60 = arith.mulf %59, %58 : vector<8x128xf32>
    %cst_17 = arith.constant 5.000000e-01 : f32
    %61 = vector.broadcast %cst_17 : f32 to vector<8x128xf32>
    %62 = arith.addf %60, %61 : vector<8x128xf32>
    %63 = arith.select %7, %58, %62 : vector<8x128xi1>, vector<8x128xf32>
    %64 = vector.extract_strided_slice %63 {offsets = [0, 0], sizes = [8, 32], strides = [1, 1]} : vector<8x128xf32> to vector<8x32xf32>
    %65 = vector.extract_strided_slice %63 {offsets = [0, 32], sizes = [8, 32], strides = [1, 1]} : vector<8x128xf32> to vector<8x32xf32>
    %66 = vector.extract_strided_slice %63 {offsets = [0, 64], sizes = [8, 32], strides = [1, 1]} : vector<8x128xf32> to vector<8x32xf32>
    %67 = vector.extract_strided_slice %63 {offsets = [0, 96], sizes = [8, 32], strides = [1, 1]} : vector<8x128xf32> to vector<8x32xf32>
    %68 = arith.mulf %65, %51 : vector<8x32xf32>
    %69 = arith.mulf %64, %66 : vector<8x32xf32>
    %70 = arith.addf %68, %69 : vector<8x32xf32>
    %71 = math.tanh %70 : vector<8x32xf32>
    %72 = arith.mulf %67, %71 : vector<8x32xf32>
    %73 = vector.extract_strided_slice %16 {offsets = [24, 0], sizes = [8, 128], strides = [1, 1]} : vector<64x128xf32> to vector<8x128xf32>
    %cst_18 = arith.constant dense<0.000000e+00> : vector<8x128xf32>
    %74 = tpu.matmul %72, %12, %cst_18 {dimension_numbers = #tpu.dot_dimension_numbers<[1], [0], [0], [1], [0, 0, 1, 1], [], []>} : vector<8x32xf32>, vector<32x128xf32>, vector<8x128xf32> -> vector<8x128xf32>
    %75 = arith.addf %73, %74 : vector<8x128xf32>
    %76 = arith.mulf %10, %75 : vector<8x128xf32>
    %77 = math.tanh %76 : vector<8x128xf32>
    %cst_19 = arith.constant 5.000000e-01 : f32
    %78 = vector.broadcast %cst_19 : f32 to vector<8x128xf32>
    %79 = arith.mulf %78, %77 : vector<8x128xf32>
    %cst_20 = arith.constant 5.000000e-01 : f32
    %80 = vector.broadcast %cst_20 : f32 to vector<8x128xf32>
    %81 = arith.addf %79, %80 : vector<8x128xf32>
    %82 = arith.select %7, %77, %81 : vector<8x128xi1>, vector<8x128xf32>
    %83 = vector.extract_strided_slice %82 {offsets = [0, 0], sizes = [8, 32], strides = [1, 1]} : vector<8x128xf32> to vector<8x32xf32>
    %84 = vector.extract_strided_slice %82 {offsets = [0, 32], sizes = [8, 32], strides = [1, 1]} : vector<8x128xf32> to vector<8x32xf32>
    %85 = vector.extract_strided_slice %82 {offsets = [0, 64], sizes = [8, 32], strides = [1, 1]} : vector<8x128xf32> to vector<8x32xf32>
    %86 = vector.extract_strided_slice %82 {offsets = [0, 96], sizes = [8, 32], strides = [1, 1]} : vector<8x128xf32> to vector<8x32xf32>
    %87 = arith.mulf %84, %70 : vector<8x32xf32>
    %88 = arith.mulf %83, %85 : vector<8x32xf32>
    %89 = arith.addf %87, %88 : vector<8x32xf32>
    %90 = math.tanh %89 : vector<8x32xf32>
    %91 = arith.mulf %86, %90 : vector<8x32xf32>
    %92 = vector.extract_strided_slice %16 {offsets = [32, 0], sizes = [8, 128], strides = [1, 1]} : vector<64x128xf32> to vector<8x128xf32>
    %cst_21 = arith.constant dense<0.000000e+00> : vector<8x128xf32>
    %93 = tpu.matmul %91, %12, %cst_21 {dimension_numbers = #tpu.dot_dimension_numbers<[1], [0], [0], [1], [0, 0, 1, 1], [], []>} : vector<8x32xf32>, vector<32x128xf32>, vector<8x128xf32> -> vector<8x128xf32>
    %94 = arith.addf %92, %93 : vector<8x128xf32>
    %95 = arith.mulf %10, %94 : vector<8x128xf32>
    %96 = math.tanh %95 : vector<8x128xf32>
    %cst_22 = arith.constant 5.000000e-01 : f32
    %97 = vector.broadcast %cst_22 : f32 to vector<8x128xf32>
    %98 = arith.mulf %97, %96 : vector<8x128xf32>
    %cst_23 = arith.constant 5.000000e-01 : f32
    %99 = vector.broadcast %cst_23 : f32 to vector<8x128xf32>
    %100 = arith.addf %98, %99 : vector<8x128xf32>
    %101 = arith.select %7, %96, %100 : vector<8x128xi1>, vector<8x128xf32>
    %102 = vector.extract_strided_slice %101 {offsets = [0, 0], sizes = [8, 32], strides = [1, 1]} : vector<8x128xf32> to vector<8x32xf32>
    %103 = vector.extract_strided_slice %101 {offsets = [0, 32], sizes = [8, 32], strides = [1, 1]} : vector<8x128xf32> to vector<8x32xf32>
    %104 = vector.extract_strided_slice %101 {offsets = [0, 64], sizes = [8, 32], strides = [1, 1]} : vector<8x128xf32> to vector<8x32xf32>
    %105 = vector.extract_strided_slice %101 {offsets = [0, 96], sizes = [8, 32], strides = [1, 1]} : vector<8x128xf32> to vector<8x32xf32>
    %106 = arith.mulf %103, %89 : vector<8x32xf32>
    %107 = arith.mulf %102, %104 : vector<8x32xf32>
    %108 = arith.addf %106, %107 : vector<8x32xf32>
    %109 = math.tanh %108 : vector<8x32xf32>
    %110 = arith.mulf %105, %109 : vector<8x32xf32>
    %111 = vector.extract_strided_slice %16 {offsets = [40, 0], sizes = [8, 128], strides = [1, 1]} : vector<64x128xf32> to vector<8x128xf32>
    %cst_24 = arith.constant dense<0.000000e+00> : vector<8x128xf32>
    %112 = tpu.matmul %110, %12, %cst_24 {dimension_numbers = #tpu.dot_dimension_numbers<[1], [0], [0], [1], [0, 0, 1, 1], [], []>} : vector<8x32xf32>, vector<32x128xf32>, vector<8x128xf32> -> vector<8x128xf32>
    %113 = arith.addf %111, %112 : vector<8x128xf32>
    %114 = arith.mulf %10, %113 : vector<8x128xf32>
    %115 = math.tanh %114 : vector<8x128xf32>
    %cst_25 = arith.constant 5.000000e-01 : f32
    %116 = vector.broadcast %cst_25 : f32 to vector<8x128xf32>
    %117 = arith.mulf %116, %115 : vector<8x128xf32>
    %cst_26 = arith.constant 5.000000e-01 : f32
    %118 = vector.broadcast %cst_26 : f32 to vector<8x128xf32>
    %119 = arith.addf %117, %118 : vector<8x128xf32>
    %120 = arith.select %7, %115, %119 : vector<8x128xi1>, vector<8x128xf32>
    %121 = vector.extract_strided_slice %120 {offsets = [0, 0], sizes = [8, 32], strides = [1, 1]} : vector<8x128xf32> to vector<8x32xf32>
    %122 = vector.extract_strided_slice %120 {offsets = [0, 32], sizes = [8, 32], strides = [1, 1]} : vector<8x128xf32> to vector<8x32xf32>
    %123 = vector.extract_strided_slice %120 {offsets = [0, 64], sizes = [8, 32], strides = [1, 1]} : vector<8x128xf32> to vector<8x32xf32>
    %124 = vector.extract_strided_slice %120 {offsets = [0, 96], sizes = [8, 32], strides = [1, 1]} : vector<8x128xf32> to vector<8x32xf32>
    %125 = arith.mulf %122, %108 : vector<8x32xf32>
    %126 = arith.mulf %121, %123 : vector<8x32xf32>
    %127 = arith.addf %125, %126 : vector<8x32xf32>
    %128 = math.tanh %127 : vector<8x32xf32>
    %129 = arith.mulf %124, %128 : vector<8x32xf32>
    %130 = vector.extract_strided_slice %16 {offsets = [48, 0], sizes = [8, 128], strides = [1, 1]} : vector<64x128xf32> to vector<8x128xf32>
    %cst_27 = arith.constant dense<0.000000e+00> : vector<8x128xf32>
    %131 = tpu.matmul %129, %12, %cst_27 {dimension_numbers = #tpu.dot_dimension_numbers<[1], [0], [0], [1], [0, 0, 1, 1], [], []>} : vector<8x32xf32>, vector<32x128xf32>, vector<8x128xf32> -> vector<8x128xf32>
    %132 = arith.addf %130, %131 : vector<8x128xf32>
    %133 = arith.mulf %10, %132 : vector<8x128xf32>
    %134 = math.tanh %133 : vector<8x128xf32>
    %cst_28 = arith.constant 5.000000e-01 : f32
    %135 = vector.broadcast %cst_28 : f32 to vector<8x128xf32>
    %136 = arith.mulf %135, %134 : vector<8x128xf32>
    %cst_29 = arith.constant 5.000000e-01 : f32
    %137 = vector.broadcast %cst_29 : f32 to vector<8x128xf32>
    %138 = arith.addf %136, %137 : vector<8x128xf32>
    %139 = arith.select %7, %134, %138 : vector<8x128xi1>, vector<8x128xf32>
    %140 = vector.extract_strided_slice %139 {offsets = [0, 0], sizes = [8, 32], strides = [1, 1]} : vector<8x128xf32> to vector<8x32xf32>
    %141 = vector.extract_strided_slice %139 {offsets = [0, 32], sizes = [8, 32], strides = [1, 1]} : vector<8x128xf32> to vector<8x32xf32>
    %142 = vector.extract_strided_slice %139 {offsets = [0, 64], sizes = [8, 32], strides = [1, 1]} : vector<8x128xf32> to vector<8x32xf32>
    %143 = vector.extract_strided_slice %139 {offsets = [0, 96], sizes = [8, 32], strides = [1, 1]} : vector<8x128xf32> to vector<8x32xf32>
    %144 = arith.mulf %141, %127 : vector<8x32xf32>
    %145 = arith.mulf %140, %142 : vector<8x32xf32>
    %146 = arith.addf %144, %145 : vector<8x32xf32>
    %147 = math.tanh %146 : vector<8x32xf32>
    %148 = arith.mulf %143, %147 : vector<8x32xf32>
    %149 = vector.extract_strided_slice %16 {offsets = [56, 0], sizes = [8, 128], strides = [1, 1]} : vector<64x128xf32> to vector<8x128xf32>
    %cst_30 = arith.constant dense<0.000000e+00> : vector<8x128xf32>
    %150 = tpu.matmul %148, %12, %cst_30 {dimension_numbers = #tpu.dot_dimension_numbers<[1], [0], [0], [1], [0, 0, 1, 1], [], []>} : vector<8x32xf32>, vector<32x128xf32>, vector<8x128xf32> -> vector<8x128xf32>
    %151 = arith.addf %149, %150 : vector<8x128xf32>
    %152 = arith.mulf %10, %151 : vector<8x128xf32>
    %153 = math.tanh %152 : vector<8x128xf32>
    %cst_31 = arith.constant 5.000000e-01 : f32
    %154 = vector.broadcast %cst_31 : f32 to vector<8x128xf32>
    %155 = arith.mulf %154, %153 : vector<8x128xf32>
    %cst_32 = arith.constant 5.000000e-01 : f32
    %156 = vector.broadcast %cst_32 : f32 to vector<8x128xf32>
    %157 = arith.addf %155, %156 : vector<8x128xf32>
    %158 = arith.select %7, %153, %157 : vector<8x128xi1>, vector<8x128xf32>
    %159 = vector.extract_strided_slice %158 {offsets = [0, 0], sizes = [8, 32], strides = [1, 1]} : vector<8x128xf32> to vector<8x32xf32>
    %160 = vector.extract_strided_slice %158 {offsets = [0, 32], sizes = [8, 32], strides = [1, 1]} : vector<8x128xf32> to vector<8x32xf32>
    %161 = vector.extract_strided_slice %158 {offsets = [0, 64], sizes = [8, 32], strides = [1, 1]} : vector<8x128xf32> to vector<8x32xf32>
    %162 = vector.extract_strided_slice %158 {offsets = [0, 96], sizes = [8, 32], strides = [1, 1]} : vector<8x128xf32> to vector<8x32xf32>
    %163 = arith.mulf %160, %146 : vector<8x32xf32>
    %164 = arith.mulf %159, %161 : vector<8x32xf32>
    %165 = arith.addf %163, %164 : vector<8x32xf32>
    %166 = math.tanh %165 : vector<8x32xf32>
    %167 = arith.mulf %162, %166 : vector<8x32xf32>
    %168 = tpu.concatenate %34, %53, %72, %91, %110, %129, %148, %167 in 0 : vector<8x32xf32>, vector<8x32xf32>, vector<8x32xf32>, vector<8x32xf32>, vector<8x32xf32>, vector<8x32xf32>, vector<8x32xf32>, vector<8x32xf32> -> vector<64x32xf32>
    %c48 = arith.constant 48 : index
    %c0_33 = arith.constant 0 : index
    %169 = vector.load %arg2[%c48, %c0_33] : memref<392x128xf32, #tpu.memory_space<vmem>>, vector<32x128xf32>
    %c80 = arith.constant 80 : index
    %c0_34 = arith.constant 0 : index
    %170 = vector.load %arg2[%c80, %c0_34] : memref<392x128xf32, #tpu.memory_space<vmem>>, vector<32x128xf32>
    %c112 = arith.constant 112 : index
    %c0_35 = arith.constant 0 : index
    %171 = vector.load %arg2[%c112, %c0_35] : memref<392x128xf32, #tpu.memory_space<vmem>>, vector<1x128xf32>
    %cst_36 = arith.constant dense<0.000000e+00> : vector<64x128xf32>
    %172 = tpu.matmul %168, %169, %cst_36 {dimension_numbers = #tpu.dot_dimension_numbers<[1], [0], [0], [1], [0, 0, 1, 1], [], []>} : vector<64x32xf32>, vector<32x128xf32>, vector<64x128xf32> -> vector<64x128xf32>
    %173 = vector.broadcast %171 : vector<1x128xf32> to vector<64x128xf32>
    %174 = arith.addf %172, %173 : vector<64x128xf32>
    %cst_37 = arith.constant 0.000000e+00 : f32
    %175 = vector.broadcast %cst_37 : f32 to vector<8x32xf32>
    %176 = vector.extract_strided_slice %174 {offsets = [0, 0], sizes = [8, 128], strides = [1, 1]} : vector<64x128xf32> to vector<8x128xf32>
    %177 = arith.mulf %10, %176 : vector<8x128xf32>
    %178 = math.tanh %177 : vector<8x128xf32>
    %cst_38 = arith.constant 5.000000e-01 : f32
    %179 = vector.broadcast %cst_38 : f32 to vector<8x128xf32>
    %180 = arith.mulf %179, %178 : vector<8x128xf32>
    %cst_39 = arith.constant 5.000000e-01 : f32
    %181 = vector.broadcast %cst_39 : f32 to vector<8x128xf32>
    %182 = arith.addf %180, %181 : vector<8x128xf32>
    %183 = arith.select %7, %178, %182 : vector<8x128xi1>, vector<8x128xf32>
    %184 = vector.extract_strided_slice %183 {offsets = [0, 0], sizes = [8, 32], strides = [1, 1]} : vector<8x128xf32> to vector<8x32xf32>
    %185 = vector.extract_strided_slice %183 {offsets = [0, 32], sizes = [8, 32], strides = [1, 1]} : vector<8x128xf32> to vector<8x32xf32>
    %186 = vector.extract_strided_slice %183 {offsets = [0, 64], sizes = [8, 32], strides = [1, 1]} : vector<8x128xf32> to vector<8x32xf32>
    %187 = vector.extract_strided_slice %183 {offsets = [0, 96], sizes = [8, 32], strides = [1, 1]} : vector<8x128xf32> to vector<8x32xf32>
    %188 = arith.mulf %185, %175 : vector<8x32xf32>
    %189 = arith.mulf %184, %186 : vector<8x32xf32>
    %190 = arith.addf %188, %189 : vector<8x32xf32>
    %191 = math.tanh %190 : vector<8x32xf32>
    %192 = arith.mulf %187, %191 : vector<8x32xf32>
    %193 = vector.extract_strided_slice %174 {offsets = [8, 0], sizes = [8, 128], strides = [1, 1]} : vector<64x128xf32> to vector<8x128xf32>
    %cst_40 = arith.constant dense<0.000000e+00> : vector<8x128xf32>
    %194 = tpu.matmul %192, %170, %cst_40 {dimension_numbers = #tpu.dot_dimension_numbers<[1], [0], [0], [1], [0, 0, 1, 1], [], []>} : vector<8x32xf32>, vector<32x128xf32>, vector<8x128xf32> -> vector<8x128xf32>
    %195 = arith.addf %193, %194 : vector<8x128xf32>
    %196 = arith.mulf %10, %195 : vector<8x128xf32>
    %197 = math.tanh %196 : vector<8x128xf32>
    %cst_41 = arith.constant 5.000000e-01 : f32
    %198 = vector.broadcast %cst_41 : f32 to vector<8x128xf32>
    %199 = arith.mulf %198, %197 : vector<8x128xf32>
    %cst_42 = arith.constant 5.000000e-01 : f32
    %200 = vector.broadcast %cst_42 : f32 to vector<8x128xf32>
    %201 = arith.addf %199, %200 : vector<8x128xf32>
    %202 = arith.select %7, %197, %201 : vector<8x128xi1>, vector<8x128xf32>
    %203 = vector.extract_strided_slice %202 {offsets = [0, 0], sizes = [8, 32], strides = [1, 1]} : vector<8x128xf32> to vector<8x32xf32>
    %204 = vector.extract_strided_slice %202 {offsets = [0, 32], sizes = [8, 32], strides = [1, 1]} : vector<8x128xf32> to vector<8x32xf32>
    %205 = vector.extract_strided_slice %202 {offsets = [0, 64], sizes = [8, 32], strides = [1, 1]} : vector<8x128xf32> to vector<8x32xf32>
    %206 = vector.extract_strided_slice %202 {offsets = [0, 96], sizes = [8, 32], strides = [1, 1]} : vector<8x128xf32> to vector<8x32xf32>
    %207 = arith.mulf %204, %190 : vector<8x32xf32>
    %208 = arith.mulf %203, %205 : vector<8x32xf32>
    %209 = arith.addf %207, %208 : vector<8x32xf32>
    %210 = math.tanh %209 : vector<8x32xf32>
    %211 = arith.mulf %206, %210 : vector<8x32xf32>
    %212 = vector.extract_strided_slice %174 {offsets = [16, 0], sizes = [8, 128], strides = [1, 1]} : vector<64x128xf32> to vector<8x128xf32>
    %cst_43 = arith.constant dense<0.000000e+00> : vector<8x128xf32>
    %213 = tpu.matmul %211, %170, %cst_43 {dimension_numbers = #tpu.dot_dimension_numbers<[1], [0], [0], [1], [0, 0, 1, 1], [], []>} : vector<8x32xf32>, vector<32x128xf32>, vector<8x128xf32> -> vector<8x128xf32>
    %214 = arith.addf %212, %213 : vector<8x128xf32>
    %215 = arith.mulf %10, %214 : vector<8x128xf32>
    %216 = math.tanh %215 : vector<8x128xf32>
    %cst_44 = arith.constant 5.000000e-01 : f32
    %217 = vector.broadcast %cst_44 : f32 to vector<8x128xf32>
    %218 = arith.mulf %217, %216 : vector<8x128xf32>
    %cst_45 = arith.constant 5.000000e-01 : f32
    %219 = vector.broadcast %cst_45 : f32 to vector<8x128xf32>
    %220 = arith.addf %218, %219 : vector<8x128xf32>
    %221 = arith.select %7, %216, %220 : vector<8x128xi1>, vector<8x128xf32>
    %222 = vector.extract_strided_slice %221 {offsets = [0, 0], sizes = [8, 32], strides = [1, 1]} : vector<8x128xf32> to vector<8x32xf32>
    %223 = vector.extract_strided_slice %221 {offsets = [0, 32], sizes = [8, 32], strides = [1, 1]} : vector<8x128xf32> to vector<8x32xf32>
    %224 = vector.extract_strided_slice %221 {offsets = [0, 64], sizes = [8, 32], strides = [1, 1]} : vector<8x128xf32> to vector<8x32xf32>
    %225 = vector.extract_strided_slice %221 {offsets = [0, 96], sizes = [8, 32], strides = [1, 1]} : vector<8x128xf32> to vector<8x32xf32>
    %226 = arith.mulf %223, %209 : vector<8x32xf32>
    %227 = arith.mulf %222, %224 : vector<8x32xf32>
    %228 = arith.addf %226, %227 : vector<8x32xf32>
    %229 = math.tanh %228 : vector<8x32xf32>
    %230 = arith.mulf %225, %229 : vector<8x32xf32>
    %231 = vector.extract_strided_slice %174 {offsets = [24, 0], sizes = [8, 128], strides = [1, 1]} : vector<64x128xf32> to vector<8x128xf32>
    %cst_46 = arith.constant dense<0.000000e+00> : vector<8x128xf32>
    %232 = tpu.matmul %230, %170, %cst_46 {dimension_numbers = #tpu.dot_dimension_numbers<[1], [0], [0], [1], [0, 0, 1, 1], [], []>} : vector<8x32xf32>, vector<32x128xf32>, vector<8x128xf32> -> vector<8x128xf32>
    %233 = arith.addf %231, %232 : vector<8x128xf32>
    %234 = arith.mulf %10, %233 : vector<8x128xf32>
    %235 = math.tanh %234 : vector<8x128xf32>
    %cst_47 = arith.constant 5.000000e-01 : f32
    %236 = vector.broadcast %cst_47 : f32 to vector<8x128xf32>
    %237 = arith.mulf %236, %235 : vector<8x128xf32>
    %cst_48 = arith.constant 5.000000e-01 : f32
    %238 = vector.broadcast %cst_48 : f32 to vector<8x128xf32>
    %239 = arith.addf %237, %238 : vector<8x128xf32>
    %240 = arith.select %7, %235, %239 : vector<8x128xi1>, vector<8x128xf32>
    %241 = vector.extract_strided_slice %240 {offsets = [0, 0], sizes = [8, 32], strides = [1, 1]} : vector<8x128xf32> to vector<8x32xf32>
    %242 = vector.extract_strided_slice %240 {offsets = [0, 32], sizes = [8, 32], strides = [1, 1]} : vector<8x128xf32> to vector<8x32xf32>
    %243 = vector.extract_strided_slice %240 {offsets = [0, 64], sizes = [8, 32], strides = [1, 1]} : vector<8x128xf32> to vector<8x32xf32>
    %244 = vector.extract_strided_slice %240 {offsets = [0, 96], sizes = [8, 32], strides = [1, 1]} : vector<8x128xf32> to vector<8x32xf32>
    %245 = arith.mulf %242, %228 : vector<8x32xf32>
    %246 = arith.mulf %241, %243 : vector<8x32xf32>
    %247 = arith.addf %245, %246 : vector<8x32xf32>
    %248 = math.tanh %247 : vector<8x32xf32>
    %249 = arith.mulf %244, %248 : vector<8x32xf32>
    %250 = vector.extract_strided_slice %174 {offsets = [32, 0], sizes = [8, 128], strides = [1, 1]} : vector<64x128xf32> to vector<8x128xf32>
    %cst_49 = arith.constant dense<0.000000e+00> : vector<8x128xf32>
    %251 = tpu.matmul %249, %170, %cst_49 {dimension_numbers = #tpu.dot_dimension_numbers<[1], [0], [0], [1], [0, 0, 1, 1], [], []>} : vector<8x32xf32>, vector<32x128xf32>, vector<8x128xf32> -> vector<8x128xf32>
    %252 = arith.addf %250, %251 : vector<8x128xf32>
    %253 = arith.mulf %10, %252 : vector<8x128xf32>
    %254 = math.tanh %253 : vector<8x128xf32>
    %cst_50 = arith.constant 5.000000e-01 : f32
    %255 = vector.broadcast %cst_50 : f32 to vector<8x128xf32>
    %256 = arith.mulf %255, %254 : vector<8x128xf32>
    %cst_51 = arith.constant 5.000000e-01 : f32
    %257 = vector.broadcast %cst_51 : f32 to vector<8x128xf32>
    %258 = arith.addf %256, %257 : vector<8x128xf32>
    %259 = arith.select %7, %254, %258 : vector<8x128xi1>, vector<8x128xf32>
    %260 = vector.extract_strided_slice %259 {offsets = [0, 0], sizes = [8, 32], strides = [1, 1]} : vector<8x128xf32> to vector<8x32xf32>
    %261 = vector.extract_strided_slice %259 {offsets = [0, 32], sizes = [8, 32], strides = [1, 1]} : vector<8x128xf32> to vector<8x32xf32>
    %262 = vector.extract_strided_slice %259 {offsets = [0, 64], sizes = [8, 32], strides = [1, 1]} : vector<8x128xf32> to vector<8x32xf32>
    %263 = vector.extract_strided_slice %259 {offsets = [0, 96], sizes = [8, 32], strides = [1, 1]} : vector<8x128xf32> to vector<8x32xf32>
    %264 = arith.mulf %261, %247 : vector<8x32xf32>
    %265 = arith.mulf %260, %262 : vector<8x32xf32>
    %266 = arith.addf %264, %265 : vector<8x32xf32>
    %267 = math.tanh %266 : vector<8x32xf32>
    %268 = arith.mulf %263, %267 : vector<8x32xf32>
    %269 = vector.extract_strided_slice %174 {offsets = [40, 0], sizes = [8, 128], strides = [1, 1]} : vector<64x128xf32> to vector<8x128xf32>
    %cst_52 = arith.constant dense<0.000000e+00> : vector<8x128xf32>
    %270 = tpu.matmul %268, %170, %cst_52 {dimension_numbers = #tpu.dot_dimension_numbers<[1], [0], [0], [1], [0, 0, 1, 1], [], []>} : vector<8x32xf32>, vector<32x128xf32>, vector<8x128xf32> -> vector<8x128xf32>
    %271 = arith.addf %269, %270 : vector<8x128xf32>
    %272 = arith.mulf %10, %271 : vector<8x128xf32>
    %273 = math.tanh %272 : vector<8x128xf32>
    %cst_53 = arith.constant 5.000000e-01 : f32
    %274 = vector.broadcast %cst_53 : f32 to vector<8x128xf32>
    %275 = arith.mulf %274, %273 : vector<8x128xf32>
    %cst_54 = arith.constant 5.000000e-01 : f32
    %276 = vector.broadcast %cst_54 : f32 to vector<8x128xf32>
    %277 = arith.addf %275, %276 : vector<8x128xf32>
    %278 = arith.select %7, %273, %277 : vector<8x128xi1>, vector<8x128xf32>
    %279 = vector.extract_strided_slice %278 {offsets = [0, 0], sizes = [8, 32], strides = [1, 1]} : vector<8x128xf32> to vector<8x32xf32>
    %280 = vector.extract_strided_slice %278 {offsets = [0, 32], sizes = [8, 32], strides = [1, 1]} : vector<8x128xf32> to vector<8x32xf32>
    %281 = vector.extract_strided_slice %278 {offsets = [0, 64], sizes = [8, 32], strides = [1, 1]} : vector<8x128xf32> to vector<8x32xf32>
    %282 = vector.extract_strided_slice %278 {offsets = [0, 96], sizes = [8, 32], strides = [1, 1]} : vector<8x128xf32> to vector<8x32xf32>
    %283 = arith.mulf %280, %266 : vector<8x32xf32>
    %284 = arith.mulf %279, %281 : vector<8x32xf32>
    %285 = arith.addf %283, %284 : vector<8x32xf32>
    %286 = math.tanh %285 : vector<8x32xf32>
    %287 = arith.mulf %282, %286 : vector<8x32xf32>
    %288 = vector.extract_strided_slice %174 {offsets = [48, 0], sizes = [8, 128], strides = [1, 1]} : vector<64x128xf32> to vector<8x128xf32>
    %cst_55 = arith.constant dense<0.000000e+00> : vector<8x128xf32>
    %289 = tpu.matmul %287, %170, %cst_55 {dimension_numbers = #tpu.dot_dimension_numbers<[1], [0], [0], [1], [0, 0, 1, 1], [], []>} : vector<8x32xf32>, vector<32x128xf32>, vector<8x128xf32> -> vector<8x128xf32>
    %290 = arith.addf %288, %289 : vector<8x128xf32>
    %291 = arith.mulf %10, %290 : vector<8x128xf32>
    %292 = math.tanh %291 : vector<8x128xf32>
    %cst_56 = arith.constant 5.000000e-01 : f32
    %293 = vector.broadcast %cst_56 : f32 to vector<8x128xf32>
    %294 = arith.mulf %293, %292 : vector<8x128xf32>
    %cst_57 = arith.constant 5.000000e-01 : f32
    %295 = vector.broadcast %cst_57 : f32 to vector<8x128xf32>
    %296 = arith.addf %294, %295 : vector<8x128xf32>
    %297 = arith.select %7, %292, %296 : vector<8x128xi1>, vector<8x128xf32>
    %298 = vector.extract_strided_slice %297 {offsets = [0, 0], sizes = [8, 32], strides = [1, 1]} : vector<8x128xf32> to vector<8x32xf32>
    %299 = vector.extract_strided_slice %297 {offsets = [0, 32], sizes = [8, 32], strides = [1, 1]} : vector<8x128xf32> to vector<8x32xf32>
    %300 = vector.extract_strided_slice %297 {offsets = [0, 64], sizes = [8, 32], strides = [1, 1]} : vector<8x128xf32> to vector<8x32xf32>
    %301 = vector.extract_strided_slice %297 {offsets = [0, 96], sizes = [8, 32], strides = [1, 1]} : vector<8x128xf32> to vector<8x32xf32>
    %302 = arith.mulf %299, %285 : vector<8x32xf32>
    %303 = arith.mulf %298, %300 : vector<8x32xf32>
    %304 = arith.addf %302, %303 : vector<8x32xf32>
    %305 = math.tanh %304 : vector<8x32xf32>
    %306 = arith.mulf %301, %305 : vector<8x32xf32>
    %307 = vector.extract_strided_slice %174 {offsets = [56, 0], sizes = [8, 128], strides = [1, 1]} : vector<64x128xf32> to vector<8x128xf32>
    %cst_58 = arith.constant dense<0.000000e+00> : vector<8x128xf32>
    %308 = tpu.matmul %306, %170, %cst_58 {dimension_numbers = #tpu.dot_dimension_numbers<[1], [0], [0], [1], [0, 0, 1, 1], [], []>} : vector<8x32xf32>, vector<32x128xf32>, vector<8x128xf32> -> vector<8x128xf32>
    %309 = arith.addf %307, %308 : vector<8x128xf32>
    %310 = arith.mulf %10, %309 : vector<8x128xf32>
    %311 = math.tanh %310 : vector<8x128xf32>
    %cst_59 = arith.constant 5.000000e-01 : f32
    %312 = vector.broadcast %cst_59 : f32 to vector<8x128xf32>
    %313 = arith.mulf %312, %311 : vector<8x128xf32>
    %cst_60 = arith.constant 5.000000e-01 : f32
    %314 = vector.broadcast %cst_60 : f32 to vector<8x128xf32>
    %315 = arith.addf %313, %314 : vector<8x128xf32>
    %316 = arith.select %7, %311, %315 : vector<8x128xi1>, vector<8x128xf32>
    %317 = vector.extract_strided_slice %316 {offsets = [0, 0], sizes = [8, 32], strides = [1, 1]} : vector<8x128xf32> to vector<8x32xf32>
    %318 = vector.extract_strided_slice %316 {offsets = [0, 32], sizes = [8, 32], strides = [1, 1]} : vector<8x128xf32> to vector<8x32xf32>
    %319 = vector.extract_strided_slice %316 {offsets = [0, 64], sizes = [8, 32], strides = [1, 1]} : vector<8x128xf32> to vector<8x32xf32>
    %320 = vector.extract_strided_slice %316 {offsets = [0, 96], sizes = [8, 32], strides = [1, 1]} : vector<8x128xf32> to vector<8x32xf32>
    %321 = arith.mulf %318, %304 : vector<8x32xf32>
    %322 = arith.mulf %317, %319 : vector<8x32xf32>
    %323 = arith.addf %321, %322 : vector<8x32xf32>
    %324 = math.tanh %323 : vector<8x32xf32>
    %325 = arith.mulf %320, %324 : vector<8x32xf32>
    %326 = tpu.concatenate %192, %211, %230, %249, %268, %287, %306, %325 in 1 : vector<8x32xf32>, vector<8x32xf32>, vector<8x32xf32>, vector<8x32xf32>, vector<8x32xf32>, vector<8x32xf32>, vector<8x32xf32>, vector<8x32xf32> -> vector<8x256xf32>
    %c120 = arith.constant 120 : index
    %c0_61 = arith.constant 0 : index
    %327 = vector.load %arg2[%c120, %c0_61] : memref<392x128xf32, #tpu.memory_space<vmem>>, vector<256x128xf32>
    %cst_62 = arith.constant dense<0.000000e+00> : vector<8x128xf32>
    %328 = tpu.matmul %326, %327, %cst_62 {dimension_numbers = #tpu.dot_dimension_numbers<[1], [0], [0], [1], [0, 0, 1, 1], [], []>} : vector<8x256xf32>, vector<256x128xf32>, vector<8x128xf32> -> vector<8x128xf32>
    %c376 = arith.constant 376 : index
    %c0_63 = arith.constant 0 : index
    %329 = vector.load %arg2[%c376, %c0_63] : memref<392x128xf32, #tpu.memory_space<vmem>>, vector<8x128xf32>
    %cst_64 = arith.constant dense<0.000000e+00> : vector<8x128xf32>
    %330 = tpu.matmul %1, %329, %cst_64 {dimension_numbers = #tpu.dot_dimension_numbers<[1], [0], [0], [1], [0, 0, 1, 1], [], []>} : vector<8x8xf32>, vector<8x128xf32>, vector<8x128xf32> -> vector<8x128xf32>
    %331 = arith.addf %328, %330 : vector<8x128xf32>
    %c384 = arith.constant 384 : index
    %c0_65 = arith.constant 0 : index
    %332 = vector.load %arg2[%c384, %c0_65] : memref<392x128xf32, #tpu.memory_space<vmem>>, vector<1x128xf32>
    %333 = vector.broadcast %332 : vector<1x128xf32> to vector<8x128xf32>
    %334 = arith.addf %331, %333 : vector<8x128xf32>
    %c0_66 = arith.constant 0 : index
    %c0_67 = arith.constant 0 : index
    %335 = vector.load %arg3[%c0_66, %c0_67] : memref<8x128xf32, #tpu.memory_space<vmem>>, vector<8x128xf32>
    tpu.vector_store %arg3[%c0_66, %c0_67], %334 {strides = array<i32>} : memref<8x128xf32, #tpu.memory_space<vmem>>, vector<8x128xf32>,
    return
  }
}

</mosaic_0001>

<llo_original>
// kernel: forward.1
$region0: #{forward.1}
  #allocation0 [shape = 'u32[]', space=smem, size = 0x4, offset = 0x4, fixed_abs, tag = 'smem constant byte address 0x4 - core index']
  #allocation1 [shape = 'u32[144,128]{1,0:T(1,128)}', space=vmem, size = 0x12000, scoped, tag = 'internal scratch']
  %s0 = inlined_call_operand.vmem [shape: f32[64,4], index: 0, kind: input, shape index: {}]
  %s1 = inlined_call_operand.vmem [shape: f32[8,8], index: 1, kind: input, shape index: {}]
  %s2 = inlined_call_operand.hbm [shape: f32[392,128], index: 2, kind: input, shape index: {}]
  %s3 = inlined_call_operand.vmem [shape: f32[8,128], index: 3, kind: output, shape index: {}]
  %s4 = sld [smem:[#allocation0]]
  $region26: #{forward.1} parent=0
    _
  %s6 = ssub.s32 1, %s4
  %s7 = scalar_select 0, %s6, %s4
  $region1: #{forward.1} parent=0
    #allocation2 [shape = 'u8[200704]{0}', space=vmem, size = 0x31000, scoped, tag = 'input window, operand 2, single buffered']
    #allocation3 [shape = 's32[1]{0}', space=sflag, size = 0x4, scoped, tag = 'scoped memory for forward.1']
    %8 = vsyncpa [#allocation3], 0
    // Predicated region
    $region2: #{forward.1} parent=1 // pred_check
      _
    $region3: #{forward.1} parent=1 // pred_check_branch
      %10 = sbr.rel (0) target = $region5
    $region4: #{forward.1} parent=1 // pred_region
      _
    $region5: #{forward.1} parent=1 // pred_fallthru
      _
    // Predicated region
    $region6: #{forward.1} parent=1 // pred_check
      _
    $region7: #{forward.1} parent=1 // pred_check_branch
      %12 = sbr.rel (0) target = $region9
    $region8: #{forward.1} parent=1 // pred_region
      _
    $region9: #{forward.1} parent=1 // pred_fallthru
      _
    // Predicated region
    $region10: #{forward.1} parent=1 // pred_check
      _
    $region11: #{forward.1} parent=1 // pred_check_branch
      %14 = sbr.rel (0) target = $region13
    $region12: #{forward.1} parent=1 // pred_region
      %s16 = ssub.s32 6272, 6272
      %17 = vsyncadd [#allocation3], %s16
      %s18 = sshll.u32 [#allocation2], 4
      %s19 = int_to_ptr.vmem [resolvable:$true] %s18
      %24 = dma.hbm_to_vmem [thread:$0]  %s2, 6272, %s19, [#allocation3], 128, 128, 8
    $region13: #{forward.1} parent=1 // pred_fallthru
      _
    // Predicated region
    $region14: #{forward.1} parent=1 // pred_check
      _
    $region15: #{forward.1} parent=1 // pred_check_branch
      %26 = sbr.rel (0) target = $region17
    $region16: #{forward.1} parent=1 // pred_region
      %27 = dma.done [#allocation3], 6272
    $region17: #{forward.1} parent=1 // pred_fallthru
      _
    %v28 = vld [vmem:[%s0] sm:$0xff]
    %v29 = vld [vmem:[%s0 + $0x8] sm:$0xff]
    %v30 = vld [vmem:[%s0 + $0x10] sm:$0xff]
    %v31 = vld [vmem:[%s0 + $0x18] sm:$0xff]
    %v32 = vld [vmem:[%s0 + $0x20] sm:$0xff]
    %v33 = vld [vmem:[%s0 + $0x28] sm:$0xff]
    %v34 = vld [vmem:[%s0 + $0x30] sm:$0xff]
    %v35 = vld [vmem:[%s0 + $0x38] sm:$0xff]
    %v36 = vld [vmem:[%s1] sm:$0xff]
    %v37 = vlaneseq
    %v38 = vand.u32 %v37, 127
    %vm39 = vcmp.ge.s32.totalorder %v38, 64
    %vm40 = vcmp.lt.s32.totalorder %v38, 96
    %vm41 = vmand %vm39, %vm40
    %v42 = vsel %vm41, 1.0, 0.5
    %v43 = vld [vmem:[#allocation2] sm:$0xf]
    %v44 = vld [vmem:[#allocation2 + $0x8] sm:$0xff]
    %v45 = vld [vmem:[#allocation2 + $0x10] sm:$0xff]
    %v46 = vld [vmem:[#allocation2 + $0x18] sm:$0xff]
    %v47 = vld [vmem:[#allocation2 + $0x20] sm:$0xff]
    %v48 = vld [vmem:[#allocation2 + $0x28] sm:$0x1]
    %v49 = vlaneseq
    %v50 = vshrl.u32 %v49, 7
    %v51 = vsub.s32 0, %v50
    %v52 = vrot.slane %v48, %v51
    %vm53 = vcmask 31744
    %v55 = vsel %vm53, %v28, 0
    %v58 = vsel %vm53, %v29, 0
    %v61 = vsel %vm53, %v30, 0
    %v64 = vsel %vm53, %v31, 0
    %v67 = vsel %vm53, %v32, 0
    %v70 = vsel %vm53, %v33, 0
    %v73 = vsel %vm53, %v34, 0
    %v76 = vsel %vm53, %v35, 0
    %vm78 = vcmask 1043456
    %v80 = vsel %vm78, %v43, 0
    %82 = vmatprep.subr.mxu0 0.0
    %83 = vmatpush1.msra.mxu0 %v80
    %84 = vmatprep.subr.mxu0 0.0
    %85 = vmatpush1.msra.mxu0 0.0
    %86 = vmatprep.subr.mxu0 0.0
    %87 = vmatpush1.msra.mxu0 0.0
    %88 = vmatprep.subr.mxu0 0.0
    %89 = vmatpush1.msra.mxu0 0.0
    %90 = vmatprep.subr.mxu0 0.0
    %91 = vmatpush1.msra.mxu0 0.0
    %92 = vmatprep.subr.mxu0 0.0
    %93 = vmatpush1.msra.mxu0 0.0
    %94 = vmatprep.subr.mxu0 0.0
    %95 = vmatpush1.msra.mxu0 0.0
    %96 = vmatprep.subr.mxu0 0.0
    %97 = vmatpush1.msra.mxu0 0.0
    %98 = vmatprep.subr.mxu0 0.0
    %99 = vmatpush1.msra.mxu0 0.0
    %100 = vmatprep.subr.mxu0 0.0
    %101 = vmatpush1.msra.mxu0 0.0
    %102 = vmatprep.subr.mxu0 0.0
    %103 = vmatpush1.msra.mxu0 0.0
    %104 = vmatprep.subr.mxu0 0.0
    %105 = vmatpush1.msra.mxu0 0.0
    %106 = vmatprep.subr.mxu0 0.0
    %107 = vmatpush1.msra.mxu0 0.0
    %108 = vmatprep.subr.mxu0 0.0
    %109 = vmatpush1.msra.mxu0 0.0
    %110 = vmatprep.subr.mxu0 0.0
    %111 = vmatpush1.msra.mxu0 0.0
    %112 = vmatprep.subr.mxu0 0.0
    %113 = vmatpush1.msra.mxu0 0.0
    %114 = vmatprep.subr.mxu0 0.0
    %115 = vmatpush1.msra.mxu0 0.0
    %116 = vmatprep.subr.mxu0 0.0
    %117 = vmatpush1.msra.mxu0 0.0
    %118 = vmatprep.subr.mxu0 0.0
    %119 = vmatpush1.msra.mxu0 0.0
    %120 = vmatprep.subr.mxu0 0.0
    %121 = vmatpush1.msra.mxu0 0.0
    %122 = vmatprep.subr.mxu0 0.0
    %123 = vmatpush1.msra.mxu0 0.0
    %124 = vmatprep.subr.mxu0 0.0
    %125 = vmatpush1.msra.mxu0 0.0
    %126 = vmatprep.subr.mxu0 0.0
    %127 = vmatpush1.msra.mxu0 0.0
    %128 = vmatprep.subr.mxu0 0.0
    %129 = vmatpush1.msra.mxu0 0.0
    %130 = vmatprep.subr.mxu0 0.0
    %131 = vmatpush1.msra.mxu0 0.0
    %132 = vmatprep.subr.mxu0 0.0
    %133 = vmatpush1.msra.mxu0 0.0
    %134 = vmatprep.subr.mxu0 0.0
    %135 = vmatpush1.msra.mxu0 0.0
    %136 = vmatprep.subr.mxu0 0.0
    %137 = vmatpush1.msra.mxu0 0.0
    %138 = vmatprep.subr.mxu0 0.0
    %139 = vmatpush1.msra.mxu0 0.0
    %140 = vmatprep.subr.mxu0 0.0
    %141 = vmatpush1.msra.mxu0 0.0
    %142 = vmatprep.subr.mxu0 0.0
    %143 = vmatpush1.msra.mxu0 0.0
    %144 = vmatprep.subr.mxu0 0.0
    %145 = vmatpush1.msra.mxu0 0.0
    %146 = vmatprep.mubr.f32.mxu0 0.0
    %147 = vmatmul.mubr.f32.gmra.mrb[0].mxu0 %v55
    %v148 = vpop.f32.mrb[0].mxu0
    %v149 = vadd.f32 %v52, %v148
    %v150 = vpop.f32.mrb[0].mxu0
    %151 = vmatprep.mubr.f32.mxu0 0.0
    %152 = vmatmul.mubr.f32.gmra.mrb[0].mxu0 %v58
    %v153 = vpop.f32.mrb[0].mxu0
    %v154 = vadd.f32 %v52, %v153
    %v155 = vpop.f32.mrb[0].mxu0
    %156 = vmatprep.mubr.f32.mxu0 0.0
    %157 = vmatmul.mubr.f32.gmra.mrb[0].mxu0 %v61
    %v158 = vpop.f32.mrb[0].mxu0
    %v159 = vadd.f32 %v52, %v158
    %v160 = vpop.f32.mrb[0].mxu0
    %161 = vmatprep.mubr.f32.mxu0 0.0
    %162 = vmatmul.mubr.f32.gmra.mrb[0].mxu0 %v64
    %v163 = vpop.f32.mrb[0].mxu0
    %v164 = vadd.f32 %v52, %v163
    %v165 = vpop.f32.mrb[0].mxu0
    %166 = vmatprep.mubr.f32.mxu0 0.0
    %167 = vmatmul.mubr.f32.gmra.mrb[0].mxu0 %v67
    %v168 = vpop.f32.mrb[0].mxu0
    %v169 = vadd.f32 %v52, %v168
    %v170 = vpop.f32.mrb[0].mxu0
    %171 = vmatprep.mubr.f32.mxu0 0.0
    %172 = vmatmul.mubr.f32.gmra.mrb[0].mxu0 %v70
    %v173 = vpop.f32.mrb[0].mxu0
    %v174 = vadd.f32 %v52, %v173
    %v175 = vpop.f32.mrb[0].mxu0
    %176 = vmatprep.mubr.f32.mxu0 0.0
    %177 = vmatmul.mubr.f32.gmra.mrb[0].mxu0 %v73
    %v178 = vpop.f32.mrb[0].mxu0
    %v179 = vadd.f32 %v52, %v178
    %v180 = vpop.f32.mrb[0].mxu0
    %181 = vmatprep.mubr.f32.mxu0 0.0
    %182 = vmatmul.mubr.f32.gmra.mrb[0].mxu0 %v76
    %v183 = vpop.f32.mrb[0].mxu0
    %v184 = vadd.f32 %v52, %v183
    %v185 = vpop.f32.mrb[0].mxu0
    %186 = vdwg.mxu0
    %v187 = vmul.f32 %v42, %v149
    %v188 = vtanh.pop %v187
    %v189 = vmul.f32 %v188, 0.5
    %v190 = vadd.f32 %v189, 0.5
    %v191 = vsel %vm41, %v188, %v190
    %v192 = vmul.f32 %v191, 0.0
    %194 = vrot.lane.b32.xlu0 %v191, 64
    %v195 = vpop.permute.xlu0 %194
    %v197 = vmul.f32 %v191, %v195
    %199 = vrot.lane.b32.xlu0 %v197, 32
    %v200 = vpop.permute.xlu0 %199
    %v202 = vadd.f32 %v192, %v200
    %v203 = vtanh.pop %v202
    %205 = vrot.lane.b32.xlu0 %v203, 64
    %v206 = vpop.permute.xlu0 %205
    %v208 = vmul.f32 %v191, %v206
    %210 = vrot.lane.b32.xlu0 %v208, 32
    %v211 = vpop.permute.xlu0 %210
    %vm212 = vcmask 261120
    %v213 = vsel %vm212, %v211, 0
    %215 = vmatprep.subr.mxu0 0.0
    %216 = vmatpush1.msra.mxu0 %v44
    %217 = vmatprep.subr.mxu0 0.0
    %218 = vmatpush1.msra.mxu0 %v45
    %219 = vmatprep.subr.mxu0 0.0
    %220 = vmatpush1.msra.mxu0 %v46
    %221 = vmatprep.subr.mxu0 0.0
    %222 = vmatpush1.msra.mxu0 %v47
    %223 = vmatprep.subr.mxu0 0.0
    %224 = vmatpush1.msra.mxu0 0.0
    %225 = vmatprep.subr.mxu0 0.0
    %226 = vmatpush1.msra.mxu0 0.0
    %227 = vmatprep.subr.mxu0 0.0
    %228 = vmatpush1.msra.mxu0 0.0
    %229 = vmatprep.subr.mxu0 0.0
    %230 = vmatpush1.msra.mxu0 0.0
    %231 = vmatprep.subr.mxu0 0.0
    %232 = vmatpush1.msra.mxu0 0.0
    %233 = vmatprep.subr.mxu0 0.0
    %234 = vmatpush1.msra.mxu0 0.0
    %235 = vmatprep.subr.mxu0 0.0
    %236 = vmatpush1.msra.mxu0 0.0
    %237 = vmatprep.subr.mxu0 0.0
    %238 = vmatpush1.msra.mxu0 0.0
    %239 = vmatprep.subr.mxu0 0.0
    %240 = vmatpush1.msra.mxu0 0.0
    %241 = vmatprep.subr.mxu0 0.0
    %242 = vmatpush1.msra.mxu0 0.0
    %243 = vmatprep.subr.mxu0 0.0
    %244 = vmatpush1.msra.mxu0 0.0
    %245 = vmatprep.subr.mxu0 0.0
    %246 = vmatpush1.msra.mxu0 0.0
    %247 = vmatprep.subr.mxu0 0.0
    %248 = vmatpush1.msra.mxu0 0.0
    %249 = vmatprep.subr.mxu0 0.0
    %250 = vmatpush1.msra.mxu0 0.0
    %251 = vmatprep.subr.mxu0 0.0
    %252 = vmatpush1.msra.mxu0 0.0
    %253 = vmatprep.subr.mxu0 0.0
    %254 = vmatpush1.msra.mxu0 0.0
    %255 = vmatprep.subr.mxu0 0.0
    %256 = vmatpush1.msra.mxu0 0.0
    %257 = vmatprep.subr.mxu0 0.0
    %258 = vmatpush1.msra.mxu0 0.0
    %259 = vmatprep.subr.mxu0 0.0
    %260 = vmatpush1.msra.mxu0 0.0
    %261 = vmatprep.subr.mxu0 0.0
    %262 = vmatpush1.msra.mxu0 0.0
    %263 = vmatprep.subr.mxu0 0.0
    %264 = vmatpush1.msra.mxu0 0.0
    %265 = vmatprep.subr.mxu0 0.0
    %266 = vmatpush1.msra.mxu0 0.0
    %267 = vmatprep.subr.mxu0 0.0
    %268 = vmatpush1.msra.mxu0 0.0
    %269 = vmatprep.subr.mxu0 0.0
    %270 = vmatpush1.msra.mxu0 0.0
    %271 = vmatprep.subr.mxu0 0.0
    %272 = vmatpush1.msra.mxu0 0.0
    %273 = vmatprep.subr.mxu0 0.0
    %274 = vmatpush1.msra.mxu0 0.0
    %275 = vmatprep.subr.mxu0 0.0
    %276 = vmatpush1.msra.mxu0 0.0
    %277 = vmatprep.subr.mxu0 0.0
    %278 = vmatpush1.msra.mxu0 0.0
    %279 = vmatprep.mubr.f32.mxu0 0.0
    %280 = vmatmul.mubr.f32.gmra.mrb[0].mxu0 %v213
    %v281 = vpop.f32.mrb[0].mxu0
    %v282 = vadd.f32 0.0, %v281
    %v283 = vpop.f32.mrb[0].mxu0
    %284 = vdwg.mxu0
    %v285 = vadd.f32 %v154, %v282
    %v286 = vmul.f32 %v42, %v285
    %v287 = vtanh.pop %v286
    %v288 = vmul.f32 %v287, 0.5
    %v289 = vadd.f32 %v288, 0.5
    %v290 = vsel %vm41, %v287, %v289
    %v291 = vmul.f32 %v290, %v202
    %293 = vrot.lane.b32.xlu0 %v290, 64
    %v294 = vpop.permute.xlu0 %293
    %v296 = vmul.f32 %v290, %v294
    %298 = vrot.lane.b32.xlu0 %v296, 32
    %v299 = vpop.permute.xlu0 %298
    %v301 = vadd.f32 %v291, %v299
    %v302 = vtanh.pop %v301
    %304 = vrot.lane.b32.xlu0 %v302, 64
    %v305 = vpop.permute.xlu0 %304
    %v307 = vmul.f32 %v290, %v305
    %309 = vrot.lane.b32.xlu0 %v307, 32
    %v310 = vpop.permute.xlu0 %309
    %v311 = vsel %vm212, %v310, 0
    %313 = vmatprep.subr.mxu0 0.0
    %314 = vmatpush1.msra.mxu0 %v44
    %315 = vmatprep.subr.mxu0 0.0
    %316 = vmatpush1.msra.mxu0 %v45
    %317 = vmatprep.subr.mxu0 0.0
    %318 = vmatpush1.msra.mxu0 %v46
    %319 = vmatprep.subr.mxu0 0.0
    %320 = vmatpush1.msra.mxu0 %v47
    %321 = vmatprep.subr.mxu0 0.0
    %322 = vmatpush1.msra.mxu0 0.0
    %323 = vmatprep.subr.mxu0 0.0
    %324 = vmatpush1.msra.mxu0 0.0
    %325 = vmatprep.subr.mxu0 0.0
    %326 = vmatpush1.msra.mxu0 0.0
    %327 = vmatprep.subr.mxu0 0.0
    %328 = vmatpush1.msra.mxu0 0.0
    %329 = vmatprep.subr.mxu0 0.0
    %330 = vmatpush1.msra.mxu0 0.0
    %331 = vmatprep.subr.mxu0 0.0
    %332 = vmatpush1.msra.mxu0 0.0
    %333 = vmatprep.subr.mxu0 0.0
    %334 = vmatpush1.msra.mxu0 0.0
    %335 = vmatprep.subr.mxu0 0.0
    %336 = vmatpush1.msra.mxu0 0.0
    %337 = vmatprep.subr.mxu0 0.0
    %338 = vmatpush1.msra.mxu0 0.0
    %339 = vmatprep.subr.mxu0 0.0
    %340 = vmatpush1.msra.mxu0 0.0
    %341 = vmatprep.subr.mxu0 0.0
    %342 = vmatpush1.msra.mxu0 0.0
    %343 = vmatprep.subr.mxu0 0.0
    %344 = vmatpush1.msra.mxu0 0.0
    %345 = vmatprep.subr.mxu0 0.0
    %346 = vmatpush1.msra.mxu0 0.0
    %347 = vmatprep.subr.mxu0 0.0
    %348 = vmatpush1.msra.mxu0 0.0
    %349 = vmatprep.subr.mxu0 0.0
    %350 = vmatpush1.msra.mxu0 0.0
    %351 = vmatprep.subr.mxu0 0.0
    %352 = vmatpush1.msra.mxu0 0.0
    %353 = vmatprep.subr.mxu0 0.0
    %354 = vmatpush1.msra.mxu0 0.0
    %355 = vmatprep.subr.mxu0 0.0
    %356 = vmatpush1.msra.mxu0 0.0
    %357 = vmatprep.subr.mxu0 0.0
    %358 = vmatpush1.msra.mxu0 0.0
    %359 = vmatprep.subr.mxu0 0.0
    %360 = vmatpush1.msra.mxu0 0.0
    %361 = vmatprep.subr.mxu0 0.0
    %362 = vmatpush1.msra.mxu0 0.0
    %363 = vmatprep.subr.mxu0 0.0
    %364 = vmatpush1.msra.mxu0 0.0
    %365 = vmatprep.subr.mxu0 0.0
    %366 = vmatpush1.msra.mxu0 0.0
    %367 = vmatprep.subr.mxu0 0.0
    %368 = vmatpush1.msra.mxu0 0.0
    %369 = vmatprep.subr.mxu0 0.0
    %370 = vmatpush1.msra.mxu0 0.0
    %371 = vmatprep.subr.mxu0 0.0
    %372 = vmatpush1.msra.mxu0 0.0
    %373 = vmatprep.subr.mxu0 0.0
    %374 = vmatpush1.msra.mxu0 0.0
    %375 = vmatprep.subr.mxu0 0.0
    %376 = vmatpush1.msra.mxu0 0.0
    %377 = vmatprep.mubr.f32.mxu0 0.0
    %378 = vmatmul.mubr.f32.gmra.mrb[0].mxu0 %v311
    %v379 = vpop.f32.mrb[0].mxu0
    %v380 = vadd.f32 0.0, %v379
    %v381 = vpop.f32.mrb[0].mxu0
    %382 = vdwg.mxu0
    %v383 = vadd.f32 %v159, %v380
    %v384 = vmul.f32 %v42, %v383
    %v385 = vtanh.pop %v384
    %v386 = vmul.f32 %v385, 0.5
    %v387 = vadd.f32 %v386, 0.5
    %v388 = vsel %vm41, %v385, %v387
    %v389 = vmul.f32 %v388, %v301
    %391 = vrot.lane.b32.xlu0 %v388, 64
    %v392 = vpop.permute.xlu0 %391
    %v394 = vmul.f32 %v388, %v392
    %396 = vrot.lane.b32.xlu0 %v394, 32
    %v397 = vpop.permute.xlu0 %396
    %v399 = vadd.f32 %v389, %v397
    %v400 = vtanh.pop %v399
    %402 = vrot.lane.b32.xlu0 %v400, 64
    %v403 = vpop.permute.xlu0 %402
    %v405 = vmul.f32 %v388, %v403
    %407 = vrot.lane.b32.xlu0 %v405, 32
    %v408 = vpop.permute.xlu0 %407
    %v409 = vsel %vm212, %v408, 0
    %411 = vmatprep.subr.mxu0 0.0
    %412 = vmatpush1.msra.mxu0 %v44
    %413 = vmatprep.subr.mxu0 0.0
    %414 = vmatpush1.msra.mxu0 %v45
    %415 = vmatprep.subr.mxu0 0.0
    %416 = vmatpush1.msra.mxu0 %v46
    %417 = vmatprep.subr.mxu0 0.0
    %418 = vmatpush1.msra.mxu0 %v47
    %419 = vmatprep.subr.mxu0 0.0
    %420 = vmatpush1.msra.mxu0 0.0
    %421 = vmatprep.subr.mxu0 0.0
    %422 = vmatpush1.msra.mxu0 0.0
    %423 = vmatprep.subr.mxu0 0.0
    %424 = vmatpush1.msra.mxu0 0.0
    %425 = vmatprep.subr.mxu0 0.0
    %426 = vmatpush1.msra.mxu0 0.0
    %427 = vmatprep.subr.mxu0 0.0
    %428 = vmatpush1.msra.mxu0 0.0
    %429 = vmatprep.subr.mxu0 0.0
    %430 = vmatpush1.msra.mxu0 0.0
    %431 = vmatprep.subr.mxu0 0.0
    %432 = vmatpush1.msra.mxu0 0.0
    %433 = vmatprep.subr.mxu0 0.0
    %434 = vmatpush1.msra.mxu0 0.0
    %435 = vmatprep.subr.mxu0 0.0
    %436 = vmatpush1.msra.mxu0 0.0
    %437 = vmatprep.subr.mxu0 0.0
    %438 = vmatpush1.msra.mxu0 0.0
    %439 = vmatprep.subr.mxu0 0.0
    %440 = vmatpush1.msra.mxu0 0.0
    %441 = vmatprep.subr.mxu0 0.0
    %442 = vmatpush1.msra.mxu0 0.0
    %443 = vmatprep.subr.mxu0 0.0
    %444 = vmatpush1.msra.mxu0 0.0
    %445 = vmatprep.subr.mxu0 0.0
    %446 = vmatpush1.msra.mxu0 0.0
    %447 = vmatprep.subr.mxu0 0.0
    %448 = vmatpush1.msra.mxu0 0.0
    %449 = vmatprep.subr.mxu0 0.0
    %450 = vmatpush1.msra.mxu0 0.0
    %451 = vmatprep.subr.mxu0 0.0
    %452 = vmatpush1.msra.mxu0 0.0
    %453 = vmatprep.subr.mxu0 0.0
    %454 = vmatpush1.msra.mxu0 0.0
    %455 = vmatprep.subr.mxu0 0.0
    %456 = vmatpush1.msra.mxu0 0.0
    %457 = vmatprep.subr.mxu0 0.0
    %458 = vmatpush1.msra.mxu0 0.0
    %459 = vmatprep.subr.mxu0 0.0
    %460 = vmatpush1.msra.mxu0 0.0
    %461 = vmatprep.subr.mxu0 0.0
    %462 = vmatpush1.msra.mxu0 0.0
    %463 = vmatprep.subr.mxu0 0.0
    %464 = vmatpush1.msra.mxu0 0.0
    %465 = vmatprep.subr.mxu0 0.0
    %466 = vmatpush1.msra.mxu0 0.0
    %467 = vmatprep.subr.mxu0 0.0
    %468 = vmatpush1.msra.mxu0 0.0
    %469 = vmatprep.subr.mxu0 0.0
    %470 = vmatpush1.msra.mxu0 0.0
    %471 = vmatprep.subr.mxu0 0.0
    %472 = vmatpush1.msra.mxu0 0.0
    %473 = vmatprep.subr.mxu0 0.0
    %474 = vmatpush1.msra.mxu0 0.0
    %475 = vmatprep.mubr.f32.mxu0 0.0
    %476 = vmatmul.mubr.f32.gmra.mrb[0].mxu0 %v409
    %v477 = vpop.f32.mrb[0].mxu0
    %v478 = vadd.f32 0.0, %v477
    %v479 = vpop.f32.mrb[0].mxu0
    %480 = vdwg.mxu0
    %v481 = vadd.f32 %v164, %v478
    %v482 = vmul.f32 %v42, %v481
    %v483 = vtanh.pop %v482
    %v484 = vmul.f32 %v483, 0.5
    %v485 = vadd.f32 %v484, 0.5
    %v486 = vsel %vm41, %v483, %v485
    %v487 = vmul.f32 %v486, %v399
    %489 = vrot.lane.b32.xlu0 %v486, 64
    %v490 = vpop.permute.xlu0 %489
    %v492 = vmul.f32 %v486, %v490
    %494 = vrot.lane.b32.xlu0 %v492, 32
    %v495 = vpop.permute.xlu0 %494
    %v497 = vadd.f32 %v487, %v495
    %v498 = vtanh.pop %v497
    %500 = vrot.lane.b32.xlu0 %v498, 64
    %v501 = vpop.permute.xlu0 %500
    %v503 = vmul.f32 %v486, %v501
    %505 = vrot.lane.b32.xlu0 %v503, 32
    %v506 = vpop.permute.xlu0 %505
    %v507 = vsel %vm212, %v506, 0
    %509 = vmatprep.subr.mxu0 0.0
    %510 = vmatpush1.msra.mxu0 %v44
    %511 = vmatprep.subr.mxu0 0.0
    %512 = vmatpush1.msra.mxu0 %v45
    %513 = vmatprep.subr.mxu0 0.0
    %514 = vmatpush1.msra.mxu0 %v46
    %515 = vmatprep.subr.mxu0 0.0
    %516 = vmatpush1.msra.mxu0 %v47
    %517 = vmatprep.subr.mxu0 0.0
    %518 = vmatpush1.msra.mxu0 0.0
    %519 = vmatprep.subr.mxu0 0.0
    %520 = vmatpush1.msra.mxu0 0.0
    %521 = vmatprep.subr.mxu0 0.0
    %522 = vmatpush1.msra.mxu0 0.0
    %523 = vmatprep.subr.mxu0 0.0
    %524 = vmatpush1.msra.mxu0 0.0
    %525 = vmatprep.subr.mxu0 0.0
    %526 = vmatpush1.msra.mxu0 0.0
    %527 = vmatprep.subr.mxu0 0.0
    %528 = vmatpush1.msra.mxu0 0.0
    %529 = vmatprep.subr.mxu0 0.0
    %530 = vmatpush1.msra.mxu0 0.0
    %531 = vmatprep.subr.mxu0 0.0
    %532 = vmatpush1.msra.mxu0 0.0
    %533 = vmatprep.subr.mxu0 0.0
    %534 = vmatpush1.msra.mxu0 0.0
    %535 = vmatprep.subr.mxu0 0.0
    %536 = vmatpush1.msra.mxu0 0.0
    %537 = vmatprep.subr.mxu0 0.0
    %538 = vmatpush1.msra.mxu0 0.0
    %539 = vmatprep.subr.mxu0 0.0
    %540 = vmatpush1.msra.mxu0 0.0
    %541 = vmatprep.subr.mxu0 0.0
    %542 = vmatpush1.msra.mxu0 0.0
    %543 = vmatprep.subr.mxu0 0.0
    %544 = vmatpush1.msra.mxu0 0.0
    %545 = vmatprep.subr.mxu0 0.0
    %546 = vmatpush1.msra.mxu0 0.0
    %547 = vmatprep.subr.mxu0 0.0
    %548 = vmatpush1.msra.mxu0 0.0
    %549 = vmatprep.subr.mxu0 0.0
    %550 = vmatpush1.msra.mxu0 0.0
    %551 = vmatprep.subr.mxu0 0.0
    %552 = vmatpush1.msra.mxu0 0.0
    %553 = vmatprep.subr.mxu0 0.0
    %554 = vmatpush1.msra.mxu0 0.0
    %555 = vmatprep.subr.mxu0 0.0
    %556 = vmatpush1.msra.mxu0 0.0
    %557 = vmatprep.subr.mxu0 0.0
    %558 = vmatpush1.msra.mxu0 0.0
    %559 = vmatprep.subr.mxu0 0.0
    %560 = vmatpush1.msra.mxu0 0.0
    %561 = vmatprep.subr.mxu0 0.0
    %562 = vmatpush1.msra.mxu0 0.0
    %563 = vmatprep.subr.mxu0 0.0
    %564 = vmatpush1.msra.mxu0 0.0
    %565 = vmatprep.subr.mxu0 0.0
    %566 = vmatpush1.msra.mxu0 0.0
    %567 = vmatprep.subr.mxu0 0.0
    %568 = vmatpush1.msra.mxu0 0.0
    %569 = vmatprep.subr.mxu0 0.0
    %570 = vmatpush1.msra.mxu0 0.0
    %571 = vmatprep.subr.mxu0 0.0
    %572 = vmatpush1.msra.mxu0 0.0
    %573 = vmatprep.mubr.f32.mxu0 0.0
    %574 = vmatmul.mubr.f32.gmra.mrb[0].mxu0 %v507
    %v575 = vpop.f32.mrb[0].mxu0
    %v576 = vadd.f32 0.0, %v575
    %v577 = vpop.f32.mrb[0].mxu0
    %578 = vdwg.mxu0
    %v579 = vadd.f32 %v169, %v576
    %v580 = vmul.f32 %v42, %v579
    %v581 = vtanh.pop %v580
    %v582 = vmul.f32 %v581, 0.5
    %v583 = vadd.f32 %v582, 0.5
    %v584 = vsel %vm41, %v581, %v583
    %v585 = vmul.f32 %v584, %v497
    %587 = vrot.lane.b32.xlu0 %v584, 64
    %v588 = vpop.permute.xlu0 %587
    %v590 = vmul.f32 %v584, %v588
    %592 = vrot.lane.b32.xlu0 %v590, 32
    %v593 = vpop.permute.xlu0 %592
    %v595 = vadd.f32 %v585, %v593
    %v596 = vtanh.pop %v595
    %598 = vrot.lane.b32.xlu0 %v596, 64
    %v599 = vpop.permute.xlu0 %598
    %v601 = vmul.f32 %v584, %v599
    %603 = vrot.lane.b32.xlu0 %v601, 32
    %v604 = vpop.permute.xlu0 %603
    %v605 = vsel %vm212, %v604, 0
    %607 = vmatprep.subr.mxu0 0.0
    %608 = vmatpush1.msra.mxu0 %v44
    %609 = vmatprep.subr.mxu0 0.0
    %610 = vmatpush1.msra.mxu0 %v45
    %611 = vmatprep.subr.mxu0 0.0
    %612 = vmatpush1.msra.mxu0 %v46
    %613 = vmatprep.subr.mxu0 0.0
    %614 = vmatpush1.msra.mxu0 %v47
    %615 = vmatprep.subr.mxu0 0.0
    %616 = vmatpush1.msra.mxu0 0.0
    %617 = vmatprep.subr.mxu0 0.0
    %618 = vmatpush1.msra.mxu0 0.0
    %619 = vmatprep.subr.mxu0 0.0
    %620 = vmatpush1.msra.mxu0 0.0
    %621 = vmatprep.subr.mxu0 0.0
    %622 = vmatpush1.msra.mxu0 0.0
    %623 = vmatprep.subr.mxu0 0.0
    %624 = vmatpush1.msra.mxu0 0.0
    %625 = vmatprep.subr.mxu0 0.0
    %626 = vmatpush1.msra.mxu0 0.0
    %627 = vmatprep.subr.mxu0 0.0
    %628 = vmatpush1.msra.mxu0 0.0
    %629 = vmatprep.subr.mxu0 0.0
    %630 = vmatpush1.msra.mxu0 0.0
    %631 = vmatprep.subr.mxu0 0.0
    %632 = vmatpush1.msra.mxu0 0.0
    %633 = vmatprep.subr.mxu0 0.0
    %634 = vmatpush1.msra.mxu0 0.0
    %635 = vmatprep.subr.mxu0 0.0
    %636 = vmatpush1.msra.mxu0 0.0
    %637 = vmatprep.subr.mxu0 0.0
    %638 = vmatpush1.msra.mxu0 0.0
    %639 = vmatprep.subr.mxu0 0.0
    %640 = vmatpush1.msra.mxu0 0.0
    %641 = vmatprep.subr.mxu0 0.0
    %642 = vmatpush1.msra.mxu0 0.0
    %643 = vmatprep.subr.mxu0 0.0
    %644 = vmatpush1.msra.mxu0 0.0
    %645 = vmatprep.subr.mxu0 0.0
    %646 = vmatpush1.msra.mxu0 0.0
    %647 = vmatprep.subr.mxu0 0.0
    %648 = vmatpush1.msra.mxu0 0.0
    %649 = vmatprep.subr.mxu0 0.0
    %650 = vmatpush1.msra.mxu0 0.0
    %651 = vmatprep.subr.mxu0 0.0
    %652 = vmatpush1.msra.mxu0 0.0
    %653 = vmatprep.subr.mxu0 0.0
    %654 = vmatpush1.msra.mxu0 0.0
    %655 = vmatprep.subr.mxu0 0.0
    %656 = vmatpush1.msra.mxu0 0.0
    %657 = vmatprep.subr.mxu0 0.0
    %658 = vmatpush1.msra.mxu0 0.0
    %659 = vmatprep.subr.mxu0 0.0
    %660 = vmatpush1.msra.mxu0 0.0
    %661 = vmatprep.subr.mxu0 0.0
    %662 = vmatpush1.msra.mxu0 0.0
    %663 = vmatprep.subr.mxu0 0.0
    %664 = vmatpush1.msra.mxu0 0.0
    %665 = vmatprep.subr.mxu0 0.0
    %666 = vmatpush1.msra.mxu0 0.0
    %667 = vmatprep.subr.mxu0 0.0
    %668 = vmatpush1.msra.mxu0 0.0
    %669 = vmatprep.subr.mxu0 0.0
    %670 = vmatpush1.msra.mxu0 0.0
    %671 = vmatprep.mubr.f32.mxu0 0.0
    %672 = vmatmul.mubr.f32.gmra.mrb[0].mxu0 %v605
    %v673 = vpop.f32.mrb[0].mxu0
    %v674 = vadd.f32 0.0, %v673
    %v675 = vpop.f32.mrb[0].mxu0
    %676 = vdwg.mxu0
    %v677 = vadd.f32 %v174, %v674
    %v678 = vmul.f32 %v42, %v677
    %v679 = vtanh.pop %v678
    %v680 = vmul.f32 %v679, 0.5
    %v681 = vadd.f32 %v680, 0.5
    %v682 = vsel %vm41, %v679, %v681
    %v683 = vmul.f32 %v682, %v595
    %685 = vrot.lane.b32.xlu0 %v682, 64
    %v686 = vpop.permute.xlu0 %685
    %v688 = vmul.f32 %v682, %v686
    %690 = vrot.lane.b32.xlu0 %v688, 32
    %v691 = vpop.permute.xlu0 %690
    %v693 = vadd.f32 %v683, %v691
    %v694 = vtanh.pop %v693
    %696 = vrot.lane.b32.xlu0 %v694, 64
    %v697 = vpop.permute.xlu0 %696
    %v699 = vmul.f32 %v682, %v697
    %701 = vrot.lane.b32.xlu0 %v699, 32
    %v702 = vpop.permute.xlu0 %701
    %v703 = vsel %vm212, %v702, 0
    %705 = vmatprep.subr.mxu0 0.0
    %706 = vmatpush1.msra.mxu0 %v44
    %707 = vmatprep.subr.mxu0 0.0
    %708 = vmatpush1.msra.mxu0 %v45
    %709 = vmatprep.subr.mxu0 0.0
    %710 = vmatpush1.msra.mxu0 %v46
    %711 = vmatprep.subr.mxu0 0.0
    %712 = vmatpush1.msra.mxu0 %v47
    %713 = vmatprep.subr.mxu0 0.0
    %714 = vmatpush1.msra.mxu0 0.0
    %715 = vmatprep.subr.mxu0 0.0
    %716 = vmatpush1.msra.mxu0 0.0
    %717 = vmatprep.subr.mxu0 0.0
    %718 = vmatpush1.msra.mxu0 0.0
    %719 = vmatprep.subr.mxu0 0.0
    %720 = vmatpush1.msra.mxu0 0.0
    %721 = vmatprep.subr.mxu0 0.0
    %722 = vmatpush1.msra.mxu0 0.0
    %723 = vmatprep.subr.mxu0 0.0
    %724 = vmatpush1.msra.mxu0 0.0
    %725 = vmatprep.subr.mxu0 0.0
    %726 = vmatpush1.msra.mxu0 0.0
    %727 = vmatprep.subr.mxu0 0.0
    %728 = vmatpush1.msra.mxu0 0.0
    %729 = vmatprep.subr.mxu0 0.0
    %730 = vmatpush1.msra.mxu0 0.0
    %731 = vmatprep.subr.mxu0 0.0
    %732 = vmatpush1.msra.mxu0 0.0
    %733 = vmatprep.subr.mxu0 0.0
    %734 = vmatpush1.msra.mxu0 0.0
    %735 = vmatprep.subr.mxu0 0.0
    %736 = vmatpush1.msra.mxu0 0.0
    %737 = vmatprep.subr.mxu0 0.0
    %738 = vmatpush1.msra.mxu0 0.0
    %739 = vmatprep.subr.mxu0 0.0
    %740 = vmatpush1.msra.mxu0 0.0
    %741 = vmatprep.subr.mxu0 0.0
    %742 = vmatpush1.msra.mxu0 0.0
    %743 = vmatprep.subr.mxu0 0.0
    %744 = vmatpush1.msra.mxu0 0.0
    %745 = vmatprep.subr.mxu0 0.0
    %746 = vmatpush1.msra.mxu0 0.0
    %747 = vmatprep.subr.mxu0 0.0
    %748 = vmatpush1.msra.mxu0 0.0
    %749 = vmatprep.subr.mxu0 0.0
    %750 = vmatpush1.msra.mxu0 0.0
    %751 = vmatprep.subr.mxu0 0.0
    %752 = vmatpush1.msra.mxu0 0.0
    %753 = vmatprep.subr.mxu0 0.0
    %754 = vmatpush1.msra.mxu0 0.0
    %755 = vmatprep.subr.mxu0 0.0
    %756 = vmatpush1.msra.mxu0 0.0
    %757 = vmatprep.subr.mxu0 0.0
    %758 = vmatpush1.msra.mxu0 0.0
    %759 = vmatprep.subr.mxu0 0.0
    %760 = vmatpush1.msra.mxu0 0.0
    %761 = vmatprep.subr.mxu0 0.0
    %762 = vmatpush1.msra.mxu0 0.0
    %763 = vmatprep.subr.mxu0 0.0
    %764 = vmatpush1.msra.mxu0 0.0
    %765 = vmatprep.subr.mxu0 0.0
    %766 = vmatpush1.msra.mxu0 0.0
    %767 = vmatprep.subr.mxu0 0.0
    %768 = vmatpush1.msra.mxu0 0.0
    %769 = vmatprep.mubr.f32.mxu0 0.0
    %770 = vmatmul.mubr.f32.gmra.mrb[0].mxu0 %v703
    %v771 = vpop.f32.mrb[0].mxu0
    %v772 = vadd.f32 0.0, %v771
    %v773 = vpop.f32.mrb[0].mxu0
    %774 = vdwg.mxu0
    %v775 = vadd.f32 %v179, %v772
    %v776 = vmul.f32 %v42, %v775
    %v777 = vtanh.pop %v776
    %v778 = vmul.f32 %v777, 0.5
    %v779 = vadd.f32 %v778, 0.5
    %v780 = vsel %vm41, %v777, %v779
    %v781 = vmul.f32 %v780, %v693
    %783 = vrot.lane.b32.xlu0 %v780, 64
    %v784 = vpop.permute.xlu0 %783
    %v786 = vmul.f32 %v780, %v784
    %788 = vrot.lane.b32.xlu0 %v786, 32
    %v789 = vpop.permute.xlu0 %788
    %v791 = vadd.f32 %v781, %v789
    %v792 = vtanh.pop %v791
    %794 = vrot.lane.b32.xlu0 %v792, 64
    %v795 = vpop.permute.xlu0 %794
    %v797 = vmul.f32 %v780, %v795
    %799 = vrot.lane.b32.xlu0 %v797, 32
    %v800 = vpop.permute.xlu0 %799
    %v801 = vsel %vm212, %v800, 0
    %803 = vmatprep.subr.mxu0 0.0
    %804 = vmatpush1.msra.mxu0 %v44
    %805 = vmatprep.subr.mxu0 0.0
    %806 = vmatpush1.msra.mxu0 %v45
    %807 = vmatprep.subr.mxu0 0.0
    %808 = vmatpush1.msra.mxu0 %v46
    %809 = vmatprep.subr.mxu0 0.0
    %810 = vmatpush1.msra.mxu0 %v47
    %811 = vmatprep.subr.mxu0 0.0
    %812 = vmatpush1.msra.mxu0 0.0
    %813 = vmatprep.subr.mxu0 0.0
    %814 = vmatpush1.msra.mxu0 0.0
    %815 = vmatprep.subr.mxu0 0.0
    %816 = vmatpush1.msra.mxu0 0.0
    %817 = vmatprep.subr.mxu0 0.0
    %818 = vmatpush1.msra.mxu0 0.0
    %819 = vmatprep.subr.mxu0 0.0
    %820 = vmatpush1.msra.mxu0 0.0
    %821 = vmatprep.subr.mxu0 0.0
    %822 = vmatpush1.msra.mxu0 0.0
    %823 = vmatprep.subr.mxu0 0.0
    %824 = vmatpush1.msra.mxu0 0.0
    %825 = vmatprep.subr.mxu0 0.0
    %826 = vmatpush1.msra.mxu0 0.0
    %827 = vmatprep.subr.mxu0 0.0
    %828 = vmatpush1.msra.mxu0 0.0
    %829 = vmatprep.subr.mxu0 0.0
    %830 = vmatpush1.msra.mxu0 0.0
    %831 = vmatprep.subr.mxu0 0.0
    %832 = vmatpush1.msra.mxu0 0.0
    %833 = vmatprep.subr.mxu0 0.0
    %834 = vmatpush1.msra.mxu0 0.0
    %835 = vmatprep.subr.mxu0 0.0
    %836 = vmatpush1.msra.mxu0 0.0
    %837 = vmatprep.subr.mxu0 0.0
    %838 = vmatpush1.msra.mxu0 0.0
    %839 = vmatprep.subr.mxu0 0.0
    %840 = vmatpush1.msra.mxu0 0.0
    %841 = vmatprep.subr.mxu0 0.0
    %842 = vmatpush1.msra.mxu0 0.0
    %843 = vmatprep.subr.mxu0 0.0
    %844 = vmatpush1.msra.mxu0 0.0
    %845 = vmatprep.subr.mxu0 0.0
    %846 = vmatpush1.msra.mxu0 0.0
    %847 = vmatprep.subr.mxu0 0.0
    %848 = vmatpush1.msra.mxu0 0.0
    %849 = vmatprep.subr.mxu0 0.0
    %850 = vmatpush1.msra.mxu0 0.0
    %851 = vmatprep.subr.mxu0 0.0
    %852 = vmatpush1.msra.mxu0 0.0
    %853 = vmatprep.subr.mxu0 0.0
    %854 = vmatpush1.msra.mxu0 0.0
    %855 = vmatprep.subr.mxu0 0.0
    %856 = vmatpush1.msra.mxu0 0.0
    %857 = vmatprep.subr.mxu0 0.0
    %858 = vmatpush1.msra.mxu0 0.0
    %859 = vmatprep.subr.mxu0 0.0
    %860 = vmatpush1.msra.mxu0 0.0
    %861 = vmatprep.subr.mxu0 0.0
    %862 = vmatpush1.msra.mxu0 0.0
    %863 = vmatprep.subr.mxu0 0.0
    %864 = vmatpush1.msra.mxu0 0.0
    %865 = vmatprep.subr.mxu0 0.0
    %866 = vmatpush1.msra.mxu0 0.0
    %867 = vmatprep.mubr.f32.mxu0 0.0
    %868 = vmatmul.mubr.f32.gmra.mrb[0].mxu0 %v801
    %v869 = vpop.f32.mrb[0].mxu0
    %v870 = vadd.f32 0.0, %v869
    %v871 = vpop.f32.mrb[0].mxu0
    %872 = vdwg.mxu0
    %v873 = vadd.f32 %v184, %v870
    %v874 = vmul.f32 %v42, %v873
    %v875 = vtanh.pop %v874
    %v876 = vmul.f32 %v875, 0.5
    %v877 = vadd.f32 %v876, 0.5
    %v878 = vsel %vm41, %v875, %v877
    %v879 = vmul.f32 %v878, %v791
    %881 = vrot.lane.b32.xlu0 %v878, 64
    %v882 = vpop.permute.xlu0 %881
    %v884 = vmul.f32 %v878, %v882
    %886 = vrot.lane.b32.xlu0 %v884, 32
    %v887 = vpop.permute.xlu0 %886
    %v889 = vadd.f32 %v879, %v887
    %v890 = vtanh.pop %v889
    %892 = vrot.lane.b32.xlu0 %v890, 64
    %v893 = vpop.permute.xlu0 %892
    %v895 = vmul.f32 %v878, %v893
    %v896 = vld [vmem:[#allocation2 + $0x30] sm:$0xff]
    %v897 = vld [vmem:[#allocation2 + $0x38] sm:$0xff]
    %v898 = vld [vmem:[#allocation2 + $0x40] sm:$0xff]
    %v899 = vld [vmem:[#allocation2 + $0x48] sm:$0xff]
    %v900 = vld [vmem:[#allocation2 + $0x50] sm:$0xff]
    %v901 = vld [vmem:[#allocation2 + $0x58] sm:$0xff]
    %v902 = vld [vmem:[#allocation2 + $0x60] sm:$0xff]
    %v903 = vld [vmem:[#allocation2 + $0x68] sm:$0xff]
    %v904 = vld [vmem:[#allocation2 + $0x70] sm:$0x1]
    %v905 = vlaneseq
    %v906 = vshrl.u32 %v905, 7
    %v907 = vsub.s32 0, %v906
    %v908 = vrot.slane %v904, %v907
    %910 = vrot.lane.b32.xlu0 %v895, 32
    %v911 = vpop.permute.xlu0 %910
    %v912 = vsel %vm212, %v911, 0
    %914 = vmatprep.subr.mxu0 0.0
    %915 = vmatpush1.msra.mxu0 %v896
    %916 = vmatprep.subr.mxu0 0.0
    %917 = vmatpush1.msra.mxu0 %v897
    %918 = vmatprep.subr.mxu0 0.0
    %919 = vmatpush1.msra.mxu0 %v898
    %920 = vmatprep.subr.mxu0 0.0
    %921 = vmatpush1.msra.mxu0 %v899
    %922 = vmatprep.subr.mxu0 0.0
    %923 = vmatpush1.msra.mxu0 0.0
    %924 = vmatprep.subr.mxu0 0.0
    %925 = vmatpush1.msra.mxu0 0.0
    %926 = vmatprep.subr.mxu0 0.0
    %927 = vmatpush1.msra.mxu0 0.0
    %928 = vmatprep.subr.mxu0 0.0
    %929 = vmatpush1.msra.mxu0 0.0
    %930 = vmatprep.subr.mxu0 0.0
    %931 = vmatpush1.msra.mxu0 0.0
    %932 = vmatprep.subr.mxu0 0.0
    %933 = vmatpush1.msra.mxu0 0.0
    %934 = vmatprep.subr.mxu0 0.0
    %935 = vmatpush1.msra.mxu0 0.0
    %936 = vmatprep.subr.mxu0 0.0
    %937 = vmatpush1.msra.mxu0 0.0
    %938 = vmatprep.subr.mxu0 0.0
    %939 = vmatpush1.msra.mxu0 0.0
    %940 = vmatprep.subr.mxu0 0.0
    %941 = vmatpush1.msra.mxu0 0.0
    %942 = vmatprep.subr.mxu0 0.0
    %943 = vmatpush1.msra.mxu0 0.0
    %944 = vmatprep.subr.mxu0 0.0
    %945 = vmatpush1.msra.mxu0 0.0
    %946 = vmatprep.subr.mxu0 0.0
    %947 = vmatpush1.msra.mxu0 0.0
    %948 = vmatprep.subr.mxu0 0.0
    %949 = vmatpush1.msra.mxu0 0.0
    %950 = vmatprep.subr.mxu0 0.0
    %951 = vmatpush1.msra.mxu0 0.0
    %952 = vmatprep.subr.mxu0 0.0
    %953 = vmatpush1.msra.mxu0 0.0
    %954 = vmatprep.subr.mxu0 0.0
    %955 = vmatpush1.msra.mxu0 0.0
    %956 = vmatprep.subr.mxu0 0.0
    %957 = vmatpush1.msra.mxu0 0.0
    %958 = vmatprep.subr.mxu0 0.0
    %959 = vmatpush1.msra.mxu0 0.0
    %960 = vmatprep.subr.mxu0 0.0
    %961 = vmatpush1.msra.mxu0 0.0
    %962 = vmatprep.subr.mxu0 0.0
    %963 = vmatpush1.msra.mxu0 0.0
    %964 = vmatprep.subr.mxu0 0.0
    %965 = vmatpush1.msra.mxu0 0.0
    %966 = vmatprep.subr.mxu0 0.0
    %967 = vmatpush1.msra.mxu0 0.0
    %968 = vmatprep.subr.mxu0 0.0
    %969 = vmatpush1.msra.mxu0 0.0
    %970 = vmatprep.subr.mxu0 0.0
    %971 = vmatpush1.msra.mxu0 0.0
    %972 = vmatprep.subr.mxu0 0.0
    %973 = vmatpush1.msra.mxu0 0.0
    %974 = vmatprep.subr.mxu0 0.0
    %975 = vmatpush1.msra.mxu0 0.0
    %976 = vmatprep.subr.mxu0 0.0
    %977 = vmatpush1.msra.mxu0 0.0
    %978 = vmatprep.mubr.f32.mxu0 0.0
    %979 = vmatmul.mubr.f32.gmra.mrb[0].mxu0 %v213
    %v980 = vpop.f32.mrb[0].mxu0
    %v981 = vadd.f32 %v908, %v980
    %v982 = vpop.f32.mrb[0].mxu0
    %983 = vmatprep.mubr.f32.mxu0 0.0
    %984 = vmatmul.mubr.f32.gmra.mrb[0].mxu0 %v311
    %v985 = vpop.f32.mrb[0].mxu0
    %v986 = vadd.f32 %v908, %v985
    %v987 = vpop.f32.mrb[0].mxu0
    %988 = vmatprep.mubr.f32.mxu0 0.0
    %989 = vmatmul.mubr.f32.gmra.mrb[0].mxu0 %v409
    %v990 = vpop.f32.mrb[0].mxu0
    %v991 = vadd.f32 %v908, %v990
    %v992 = vpop.f32.mrb[0].mxu0
    %993 = vmatprep.mubr.f32.mxu0 0.0
    %994 = vmatmul.mubr.f32.gmra.mrb[0].mxu0 %v507
    %v995 = vpop.f32.mrb[0].mxu0
    %v996 = vadd.f32 %v908, %v995
    %v997 = vpop.f32.mrb[0].mxu0
    %998 = vmatprep.mubr.f32.mxu0 0.0
    %999 = vmatmul.mubr.f32.gmra.mrb[0].mxu0 %v605
    %v1000 = vpop.f32.mrb[0].mxu0
    %v1001 = vadd.f32 %v908, %v1000
    %v1002 = vpop.f32.mrb[0].mxu0
    %1003 = vmatprep.mubr.f32.mxu0 0.0
    %1004 = vmatmul.mubr.f32.gmra.mrb[0].mxu0 %v703
    %v1005 = vpop.f32.mrb[0].mxu0
    %v1006 = vadd.f32 %v908, %v1005
    %v1007 = vpop.f32.mrb[0].mxu0
    %1008 = vmatprep.mubr.f32.mxu0 0.0
    %1009 = vmatmul.mubr.f32.gmra.mrb[0].mxu0 %v801
    %v1010 = vpop.f32.mrb[0].mxu0
    %v1011 = vadd.f32 %v908, %v1010
    %v1012 = vpop.f32.mrb[0].mxu0
    %1013 = vmatprep.mubr.f32.mxu0 0.0
    %1014 = vmatmul.mubr.f32.gmra.mrb[0].mxu0 %v912
    %v1015 = vpop.f32.mrb[0].mxu0
    %v1016 = vadd.f32 %v908, %v1015
    %v1017 = vpop.f32.mrb[0].mxu0
    %1018 = vdwg.mxu0
    %v1019 = vmul.f32 %v42, %v981
    %v1020 = vtanh.pop %v1019
    %v1021 = vmul.f32 %v1020, 0.5
    %v1022 = vadd.f32 %v1021, 0.5
    %v1023 = vsel %vm41, %v1020, %v1022
    %v1024 = vmul.f32 %v1023, 0.0
    %1026 = vrot.lane.b32.xlu0 %v1023, 64
    %v1027 = vpop.permute.xlu0 %1026
    %v1029 = vmul.f32 %v1023, %v1027
    %1031 = vrot.lane.b32.xlu0 %v1029, 32
    %v1032 = vpop.permute.xlu0 %1031
    %v1034 = vadd.f32 %v1024, %v1032
    %v1035 = vtanh.pop %v1034
    %1037 = vrot.lane.b32.xlu0 %v1035, 64
    %v1038 = vpop.permute.xlu0 %1037
    %v1040 = vmul.f32 %v1023, %v1038
    %1042 = vrot.lane.b32.xlu0 %v1040, 32
    %v1043 = vpop.permute.xlu0 %1042
    %v1044 = vsel %vm212, %v1043, 0
    %1046 = vmatprep.subr.mxu0 0.0
    %1047 = vmatpush1.msra.mxu0 %v900
    %1048 = vmatprep.subr.mxu0 0.0
    %1049 = vmatpush1.msra.mxu0 %v901
    %1050 = vmatprep.subr.mxu0 0.0
    %1051 = vmatpush1.msra.mxu0 %v902
    %1052 = vmatprep.subr.mxu0 0.0
    %1053 = vmatpush1.msra.mxu0 %v903
    %1054 = vmatprep.subr.mxu0 0.0
    %1055 = vmatpush1.msra.mxu0 0.0
    %1056 = vmatprep.subr.mxu0 0.0
    %1057 = vmatpush1.msra.mxu0 0.0
    %1058 = vmatprep.subr.mxu0 0.0
    %1059 = vmatpush1.msra.mxu0 0.0
    %1060 = vmatprep.subr.mxu0 0.0
    %1061 = vmatpush1.msra.mxu0 0.0
    %1062 = vmatprep.subr.mxu0 0.0
    %1063 = vmatpush1.msra.mxu0 0.0
    %1064 = vmatprep.subr.mxu0 0.0
    %1065 = vmatpush1.msra.mxu0 0.0
    %1066 = vmatprep.subr.mxu0 0.0
    %1067 = vmatpush1.msra.mxu0 0.0
    %1068 = vmatprep.subr.mxu0 0.0
    %1069 = vmatpush1.msra.mxu0 0.0
    %1070 = vmatprep.subr.mxu0 0.0
    %1071 = vmatpush1.msra.mxu0 0.0
    %1072 = vmatprep.subr.mxu0 0.0
    %1073 = vmatpush1.msra.mxu0 0.0
    %1074 = vmatprep.subr.mxu0 0.0
    %1075 = vmatpush1.msra.mxu0 0.0
    %1076 = vmatprep.subr.mxu0 0.0
    %1077 = vmatpush1.msra.mxu0 0.0
    %1078 = vmatprep.subr.mxu0 0.0
    %1079 = vmatpush1.msra.mxu0 0.0
    %1080 = vmatprep.subr.mxu0 0.0
    %1081 = vmatpush1.msra.mxu0 0.0
    %1082 = vmatprep.subr.mxu0 0.0
    %1083 = vmatpush1.msra.mxu0 0.0
    %1084 = vmatprep.subr.mxu0 0.0
    %1085 = vmatpush1.msra.mxu0 0.0
    %1086 = vmatprep.subr.mxu0 0.0
    %1087 = vmatpush1.msra.mxu0 0.0
    %1088 = vmatprep.subr.mxu0 0.0
    %1089 = vmatpush1.msra.mxu0 0.0
    %1090 = vmatprep.subr.mxu0 0.0
    %1091 = vmatpush1.msra.mxu0 0.0
    %1092 = vmatprep.subr.mxu0 0.0
    %1093 = vmatpush1.msra.mxu0 0.0
    %1094 = vmatprep.subr.mxu0 0.0
    %1095 = vmatpush1.msra.mxu0 0.0
    %1096 = vmatprep.subr.mxu0 0.0
    %1097 = vmatpush1.msra.mxu0 0.0
    %1098 = vmatprep.subr.mxu0 0.0
    %1099 = vmatpush1.msra.mxu0 0.0
    %1100 = vmatprep.subr.mxu0 0.0
    %1101 = vmatpush1.msra.mxu0 0.0
    %1102 = vmatprep.subr.mxu0 0.0
    %1103 = vmatpush1.msra.mxu0 0.0
    %1104 = vmatprep.subr.mxu0 0.0
    %1105 = vmatpush1.msra.mxu0 0.0
    %1106 = vmatprep.subr.mxu0 0.0
    %1107 = vmatpush1.msra.mxu0 0.0
    %1108 = vmatprep.subr.mxu0 0.0
    %1109 = vmatpush1.msra.mxu0 0.0
    %1110 = vmatprep.mubr.f32.mxu0 0.0
    %1111 = vmatmul.mubr.f32.gmra.mrb[0].mxu0 %v1044
    %v1112 = vpop.f32.mrb[0].mxu0
    %v1113 = vadd.f32 0.0, %v1112
    %v1114 = vpop.f32.mrb[0].mxu0
    %1115 = vdwg.mxu0
    %v1116 = vadd.f32 %v986, %v1113
    %v1117 = vmul.f32 %v42, %v1116
    %v1118 = vtanh.pop %v1117
    %v1119 = vmul.f32 %v1118, 0.5
    %v1120 = vadd.f32 %v1119, 0.5
    %v1121 = vsel %vm41, %v1118, %v1120
    %v1122 = vmul.f32 %v1121, %v1034
    %1124 = vrot.lane.b32.xlu0 %v1121, 64
    %v1125 = vpop.permute.xlu0 %1124
    %v1127 = vmul.f32 %v1121, %v1125
    %1129 = vrot.lane.b32.xlu0 %v1127, 32
    %v1130 = vpop.permute.xlu0 %1129
    %v1132 = vadd.f32 %v1122, %v1130
    %v1133 = vtanh.pop %v1132
    %1135 = vrot.lane.b32.xlu0 %v1133, 64
    %v1136 = vpop.permute.xlu0 %1135
    %v1138 = vmul.f32 %v1121, %v1136
    %1140 = vrot.lane.b32.xlu0 %v1138, 32
    %v1141 = vpop.permute.xlu0 %1140
    %v1142 = vsel %vm212, %v1141, 0
    %1144 = vmatprep.subr.mxu0 0.0
    %1145 = vmatpush1.msra.mxu0 %v900
    %1146 = vmatprep.subr.mxu0 0.0
    %1147 = vmatpush1.msra.mxu0 %v901
    %1148 = vmatprep.subr.mxu0 0.0
    %1149 = vmatpush1.msra.mxu0 %v902
    %1150 = vmatprep.subr.mxu0 0.0
    %1151 = vmatpush1.msra.mxu0 %v903
    %1152 = vmatprep.subr.mxu0 0.0
    %1153 = vmatpush1.msra.mxu0 0.0
    %1154 = vmatprep.subr.mxu0 0.0
    %1155 = vmatpush1.msra.mxu0 0.0
    %1156 = vmatprep.subr.mxu0 0.0
    %1157 = vmatpush1.msra.mxu0 0.0
    %1158 = vmatprep.subr.mxu0 0.0
    %1159 = vmatpush1.msra.mxu0 0.0
    %1160 = vmatprep.subr.mxu0 0.0
    %1161 = vmatpush1.msra.mxu0 0.0
    %1162 = vmatprep.subr.mxu0 0.0
    %1163 = vmatpush1.msra.mxu0 0.0
    %1164 = vmatprep.subr.mxu0 0.0
    %1165 = vmatpush1.msra.mxu0 0.0
    %1166 = vmatprep.subr.mxu0 0.0
    %1167 = vmatpush1.msra.mxu0 0.0
    %1168 = vmatprep.subr.mxu0 0.0
    %1169 = vmatpush1.msra.mxu0 0.0
    %1170 = vmatprep.subr.mxu0 0.0
    %1171 = vmatpush1.msra.mxu0 0.0
    %1172 = vmatprep.subr.mxu0 0.0
    %1173 = vmatpush1.msra.mxu0 0.0
    %1174 = vmatprep.subr.mxu0 0.0
    %1175 = vmatpush1.msra.mxu0 0.0
    %1176 = vmatprep.subr.mxu0 0.0
    %1177 = vmatpush1.msra.mxu0 0.0
    %1178 = vmatprep.subr.mxu0 0.0
    %1179 = vmatpush1.msra.mxu0 0.0
    %1180 = vmatprep.subr.mxu0 0.0
    %1181 = vmatpush1.msra.mxu0 0.0
    %1182 = vmatprep.subr.mxu0 0.0
    %1183 = vmatpush1.msra.mxu0 0.0
    %1184 = vmatprep.subr.mxu0 0.0
    %1185 = vmatpush1.msra.mxu0 0.0
    %1186 = vmatprep.subr.mxu0 0.0
    %1187 = vmatpush1.msra.mxu0 0.0
    %1188 = vmatprep.subr.mxu0 0.0
    %1189 = vmatpush1.msra.mxu0 0.0
    %1190 = vmatprep.subr.mxu0 0.0
    %1191 = vmatpush1.msra.mxu0 0.0
    %1192 = vmatprep.subr.mxu0 0.0
    %1193 = vmatpush1.msra.mxu0 0.0
    %1194 = vmatprep.subr.mxu0 0.0
    %1195 = vmatpush1.msra.mxu0 0.0
    %1196 = vmatprep.subr.mxu0 0.0
    %1197 = vmatpush1.msra.mxu0 0.0
    %1198 = vmatprep.subr.mxu0 0.0
    %1199 = vmatpush1.msra.mxu0 0.0
    %1200 = vmatprep.subr.mxu0 0.0
    %1201 = vmatpush1.msra.mxu0 0.0
    %1202 = vmatprep.subr.mxu0 0.0
    %1203 = vmatpush1.msra.mxu0 0.0
    %1204 = vmatprep.subr.mxu0 0.0
    %1205 = vmatpush1.msra.mxu0 0.0
    %1206 = vmatprep.subr.mxu0 0.0
    %1207 = vmatpush1.msra.mxu0 0.0
    %1208 = vmatprep.mubr.f32.mxu0 0.0
    %1209 = vmatmul.mubr.f32.gmra.mrb[0].mxu0 %v1142
    %v1210 = vpop.f32.mrb[0].mxu0
    %v1211 = vadd.f32 0.0, %v1210
    %v1212 = vpop.f32.mrb[0].mxu0
    %1213 = vdwg.mxu0
    %v1214 = vadd.f32 %v991, %v1211
    %v1215 = vmul.f32 %v42, %v1214
    %v1216 = vtanh.pop %v1215
    %v1217 = vmul.f32 %v1216, 0.5
    %v1218 = vadd.f32 %v1217, 0.5
    %v1219 = vsel %vm41, %v1216, %v1218
    %v1220 = vmul.f32 %v1219, %v1132
    %1222 = vrot.lane.b32.xlu0 %v1219, 64
    %v1223 = vpop.permute.xlu0 %1222
    %v1225 = vmul.f32 %v1219, %v1223
    %1227 = vrot.lane.b32.xlu0 %v1225, 32
    %v1228 = vpop.permute.xlu0 %1227
    %v1230 = vadd.f32 %v1220, %v1228
    %v1231 = vtanh.pop %v1230
    %1233 = vrot.lane.b32.xlu0 %v1231, 64
    %v1234 = vpop.permute.xlu0 %1233
    %v1236 = vmul.f32 %v1219, %v1234
    %1238 = vrot.lane.b32.xlu0 %v1236, 32
    %v1239 = vpop.permute.xlu0 %1238
    %v1240 = vsel %vm212, %v1239, 0
    %1242 = vmatprep.subr.mxu0 0.0
    %1243 = vmatpush1.msra.mxu0 %v900
    %1244 = vmatprep.subr.mxu0 0.0
    %1245 = vmatpush1.msra.mxu0 %v901
    %1246 = vmatprep.subr.mxu0 0.0
    %1247 = vmatpush1.msra.mxu0 %v902
    %1248 = vmatprep.subr.mxu0 0.0
    %1249 = vmatpush1.msra.mxu0 %v903
    %1250 = vmatprep.subr.mxu0 0.0
    %1251 = vmatpush1.msra.mxu0 0.0
    %1252 = vmatprep.subr.mxu0 0.0
    %1253 = vmatpush1.msra.mxu0 0.0
    %1254 = vmatprep.subr.mxu0 0.0
    %1255 = vmatpush1.msra.mxu0 0.0
    %1256 = vmatprep.subr.mxu0 0.0
    %1257 = vmatpush1.msra.mxu0 0.0
    %1258 = vmatprep.subr.mxu0 0.0
    %1259 = vmatpush1.msra.mxu0 0.0
    %1260 = vmatprep.subr.mxu0 0.0
    %1261 = vmatpush1.msra.mxu0 0.0
    %1262 = vmatprep.subr.mxu0 0.0
    %1263 = vmatpush1.msra.mxu0 0.0
    %1264 = vmatprep.subr.mxu0 0.0
    %1265 = vmatpush1.msra.mxu0 0.0
    %1266 = vmatprep.subr.mxu0 0.0
    %1267 = vmatpush1.msra.mxu0 0.0
    %1268 = vmatprep.subr.mxu0 0.0
    %1269 = vmatpush1.msra.mxu0 0.0
    %1270 = vmatprep.subr.mxu0 0.0
    %1271 = vmatpush1.msra.mxu0 0.0
    %1272 = vmatprep.subr.mxu0 0.0
    %1273 = vmatpush1.msra.mxu0 0.0
    %1274 = vmatprep.subr.mxu0 0.0
    %1275 = vmatpush1.msra.mxu0 0.0
    %1276 = vmatprep.subr.mxu0 0.0
    %1277 = vmatpush1.msra.mxu0 0.0
    %1278 = vmatprep.subr.mxu0 0.0
    %1279 = vmatpush1.msra.mxu0 0.0
    %1280 = vmatprep.subr.mxu0 0.0
    %1281 = vmatpush1.msra.mxu0 0.0
    %1282 = vmatprep.subr.mxu0 0.0
    %1283 = vmatpush1.msra.mxu0 0.0
    %1284 = vmatprep.subr.mxu0 0.0
    %1285 = vmatpush1.msra.mxu0 0.0
    %1286 = vmatprep.subr.mxu0 0.0
    %1287 = vmatpush1.msra.mxu0 0.0
    %1288 = vmatprep.subr.mxu0 0.0
    %1289 = vmatpush1.msra.mxu0 0.0
    %1290 = vmatprep.subr.mxu0 0.0
    %1291 = vmatpush1.msra.mxu0 0.0
    %1292 = vmatprep.subr.mxu0 0.0
    %1293 = vmatpush1.msra.mxu0 0.0
    %1294 = vmatprep.subr.mxu0 0.0
    %1295 = vmatpush1.msra.mxu0 0.0
    %1296 = vmatprep.subr.mxu0 0.0
    %1297 = vmatpush1.msra.mxu0 0.0
    %1298 = vmatprep.subr.mxu0 0.0
    %1299 = vmatpush1.msra.mxu0 0.0
    %1300 = vmatprep.subr.mxu0 0.0
    %1301 = vmatpush1.msra.mxu0 0.0
    %1302 = vmatprep.subr.mxu0 0.0
    %1303 = vmatpush1.msra.mxu0 0.0
    %1304 = vmatprep.subr.mxu0 0.0
    %1305 = vmatpush1.msra.mxu0 0.0
    %1306 = vmatprep.mubr.f32.mxu0 0.0
    %1307 = vmatmul.mubr.f32.gmra.mrb[0].mxu0 %v1240
    %v1308 = vpop.f32.mrb[0].mxu0
    %v1309 = vadd.f32 0.0, %v1308
    %v1310 = vpop.f32.mrb[0].mxu0
    %1311 = vdwg.mxu0
    %v1312 = vadd.f32 %v996, %v1309
    %v1313 = vmul.f32 %v42, %v1312
    %v1314 = vtanh.pop %v1313
    %v1315 = vmul.f32 %v1314, 0.5
    %v1316 = vadd.f32 %v1315, 0.5
    %v1317 = vsel %vm41, %v1314, %v1316
    %v1318 = vmul.f32 %v1317, %v1230
    %1320 = vrot.lane.b32.xlu0 %v1317, 64
    %v1321 = vpop.permute.xlu0 %1320
    %v1323 = vmul.f32 %v1317, %v1321
    %1325 = vrot.lane.b32.xlu0 %v1323, 32
    %v1326 = vpop.permute.xlu0 %1325
    %v1328 = vadd.f32 %v1318, %v1326
    %v1329 = vtanh.pop %v1328
    %1331 = vrot.lane.b32.xlu0 %v1329, 64
    %v1332 = vpop.permute.xlu0 %1331
    %v1334 = vmul.f32 %v1317, %v1332
    %1336 = vrot.lane.b32.xlu0 %v1334, 32
    %v1337 = vpop.permute.xlu0 %1336
    %v1338 = vsel %vm212, %v1337, 0
    %1340 = vmatprep.subr.mxu0 0.0
    %1341 = vmatpush1.msra.mxu0 %v900
    %1342 = vmatprep.subr.mxu0 0.0
    %1343 = vmatpush1.msra.mxu0 %v901
    %1344 = vmatprep.subr.mxu0 0.0
    %1345 = vmatpush1.msra.mxu0 %v902
    %1346 = vmatprep.subr.mxu0 0.0
    %1347 = vmatpush1.msra.mxu0 %v903
    %1348 = vmatprep.subr.mxu0 0.0
    %1349 = vmatpush1.msra.mxu0 0.0
    %1350 = vmatprep.subr.mxu0 0.0
    %1351 = vmatpush1.msra.mxu0 0.0
    %1352 = vmatprep.subr.mxu0 0.0
    %1353 = vmatpush1.msra.mxu0 0.0
    %1354 = vmatprep.subr.mxu0 0.0
    %1355 = vmatpush1.msra.mxu0 0.0
    %1356 = vmatprep.subr.mxu0 0.0
    %1357 = vmatpush1.msra.mxu0 0.0
    %1358 = vmatprep.subr.mxu0 0.0
    %1359 = vmatpush1.msra.mxu0 0.0
    %1360 = vmatprep.subr.mxu0 0.0
    %1361 = vmatpush1.msra.mxu0 0.0
    %1362 = vmatprep.subr.mxu0 0.0
    %1363 = vmatpush1.msra.mxu0 0.0
    %1364 = vmatprep.subr.mxu0 0.0
    %1365 = vmatpush1.msra.mxu0 0.0
    %1366 = vmatprep.subr.mxu0 0.0
    %1367 = vmatpush1.msra.mxu0 0.0
    %1368 = vmatprep.subr.mxu0 0.0
    %1369 = vmatpush1.msra.mxu0 0.0
    %1370 = vmatprep.subr.mxu0 0.0
    %1371 = vmatpush1.msra.mxu0 0.0
    %1372 = vmatprep.subr.mxu0 0.0
    %1373 = vmatpush1.msra.mxu0 0.0
    %1374 = vmatprep.subr.mxu0 0.0
    %1375 = vmatpush1.msra.mxu0 0.0
    %1376 = vmatprep.subr.mxu0 0.0
    %1377 = vmatpush1.msra.mxu0 0.0
    %1378 = vmatprep.subr.mxu0 0.0
    %1379 = vmatpush1.msra.mxu0 0.0
    %1380 = vmatprep.subr.mxu0 0.0
    %1381 = vmatpush1.msra.mxu0 0.0
    %1382 = vmatprep.subr.mxu0 0.0
    %1383 = vmatpush1.msra.mxu0 0.0
    %1384 = vmatprep.subr.mxu0 0.0
    %1385 = vmatpush1.msra.mxu0 0.0
    %1386 = vmatprep.subr.mxu0 0.0
    %1387 = vmatpush1.msra.mxu0 0.0
    %1388 = vmatprep.subr.mxu0 0.0
    %1389 = vmatpush1.msra.mxu0 0.0
    %1390 = vmatprep.subr.mxu0 0.0
    %1391 = vmatpush1.msra.mxu0 0.0
    %1392 = vmatprep.subr.mxu0 0.0
    %1393 = vmatpush1.msra.mxu0 0.0
    %1394 = vmatprep.subr.mxu0 0.0
    %1395 = vmatpush1.msra.mxu0 0.0
    %1396 = vmatprep.subr.mxu0 0.0
    %1397 = vmatpush1.msra.mxu0 0.0
    %1398 = vmatprep.subr.mxu0 0.0
    %1399 = vmatpush1.msra.mxu0 0.0
    %1400 = vmatprep.subr.mxu0 0.0
    %1401 = vmatpush1.msra.mxu0 0.0
    %1402 = vmatprep.subr.mxu0 0.0
    %1403 = vmatpush1.msra.mxu0 0.0
    %1404 = vmatprep.mubr.f32.mxu0 0.0
    %1405 = vmatmul.mubr.f32.gmra.mrb[0].mxu0 %v1338
    %v1406 = vpop.f32.mrb[0].mxu0
    %v1407 = vadd.f32 0.0, %v1406
    %v1408 = vpop.f32.mrb[0].mxu0
    %1409 = vdwg.mxu0
    %v1410 = vadd.f32 %v1001, %v1407
    %v1411 = vmul.f32 %v42, %v1410
    %v1412 = vtanh.pop %v1411
    %v1413 = vmul.f32 %v1412, 0.5
    %v1414 = vadd.f32 %v1413, 0.5
    %v1415 = vsel %vm41, %v1412, %v1414
    %v1416 = vmul.f32 %v1415, %v1328
    %1418 = vrot.lane.b32.xlu0 %v1415, 64
    %v1419 = vpop.permute.xlu0 %1418
    %v1421 = vmul.f32 %v1415, %v1419
    %1423 = vrot.lane.b32.xlu0 %v1421, 32
    %v1424 = vpop.permute.xlu0 %1423
    %v1426 = vadd.f32 %v1416, %v1424
    %v1427 = vtanh.pop %v1426
    %1429 = vrot.lane.b32.xlu0 %v1427, 64
    %v1430 = vpop.permute.xlu0 %1429
    %v1432 = vmul.f32 %v1415, %v1430
    %1434 = vrot.lane.b32.xlu0 %v1432, 32
    %v1435 = vpop.permute.xlu0 %1434
    %v1436 = vsel %vm212, %v1435, 0
    %1438 = vmatprep.subr.mxu0 0.0
    %1439 = vmatpush1.msra.mxu0 %v900
    %1440 = vmatprep.subr.mxu0 0.0
    %1441 = vmatpush1.msra.mxu0 %v901
    %1442 = vmatprep.subr.mxu0 0.0
    %1443 = vmatpush1.msra.mxu0 %v902
    %1444 = vmatprep.subr.mxu0 0.0
    %1445 = vmatpush1.msra.mxu0 %v903
    %1446 = vmatprep.subr.mxu0 0.0
    %1447 = vmatpush1.msra.mxu0 0.0
    %1448 = vmatprep.subr.mxu0 0.0
    %1449 = vmatpush1.msra.mxu0 0.0
    %1450 = vmatprep.subr.mxu0 0.0
    %1451 = vmatpush1.msra.mxu0 0.0
    %1452 = vmatprep.subr.mxu0 0.0
    %1453 = vmatpush1.msra.mxu0 0.0
    %1454 = vmatprep.subr.mxu0 0.0
    %1455 = vmatpush1.msra.mxu0 0.0
    %1456 = vmatprep.subr.mxu0 0.0
    %1457 = vmatpush1.msra.mxu0 0.0
    %1458 = vmatprep.subr.mxu0 0.0
    %1459 = vmatpush1.msra.mxu0 0.0
    %1460 = vmatprep.subr.mxu0 0.0
    %1461 = vmatpush1.msra.mxu0 0.0
    %1462 = vmatprep.subr.mxu0 0.0
    %1463 = vmatpush1.msra.mxu0 0.0
    %1464 = vmatprep.subr.mxu0 0.0
    %1465 = vmatpush1.msra.mxu0 0.0
    %1466 = vmatprep.subr.mxu0 0.0
    %1467 = vmatpush1.msra.mxu0 0.0
    %1468 = vmatprep.subr.mxu0 0.0
    %1469 = vmatpush1.msra.mxu0 0.0
    %1470 = vmatprep.subr.mxu0 0.0
    %1471 = vmatpush1.msra.mxu0 0.0
    %1472 = vmatprep.subr.mxu0 0.0
    %1473 = vmatpush1.msra.mxu0 0.0
    %1474 = vmatprep.subr.mxu0 0.0
    %1475 = vmatpush1.msra.mxu0 0.0
    %1476 = vmatprep.subr.mxu0 0.0
    %1477 = vmatpush1.msra.mxu0 0.0
    %1478 = vmatprep.subr.mxu0 0.0
    %1479 = vmatpush1.msra.mxu0 0.0
    %1480 = vmatprep.subr.mxu0 0.0
    %1481 = vmatpush1.msra.mxu0 0.0
    %1482 = vmatprep.subr.mxu0 0.0
    %1483 = vmatpush1.msra.mxu0 0.0
    %1484 = vmatprep.subr.mxu0 0.0
    %1485 = vmatpush1.msra.mxu0 0.0
    %1486 = vmatprep.subr.mxu0 0.0
    %1487 = vmatpush1.msra.mxu0 0.0
    %1488 = vmatprep.subr.mxu0 0.0
    %1489 = vmatpush1.msra.mxu0 0.0
    %1490 = vmatprep.subr.mxu0 0.0
    %1491 = vmatpush1.msra.mxu0 0.0
    %1492 = vmatprep.subr.mxu0 0.0
    %1493 = vmatpush1.msra.mxu0 0.0
    %1494 = vmatprep.subr.mxu0 0.0
    %1495 = vmatpush1.msra.mxu0 0.0
    %1496 = vmatprep.subr.mxu0 0.0
    %1497 = vmatpush1.msra.mxu0 0.0
    %1498 = vmatprep.subr.mxu0 0.0
    %1499 = vmatpush1.msra.mxu0 0.0
    %1500 = vmatprep.subr.mxu0 0.0
    %1501 = vmatpush1.msra.mxu0 0.0
    %1502 = vmatprep.mubr.f32.mxu0 0.0
    %1503 = vmatmul.mubr.f32.gmra.mrb[0].mxu0 %v1436
    %v1504 = vpop.f32.mrb[0].mxu0
    %v1505 = vadd.f32 0.0, %v1504
    %v1506 = vpop.f32.mrb[0].mxu0
    %1507 = vdwg.mxu0
    %v1508 = vadd.f32 %v1006, %v1505
    %v1509 = vmul.f32 %v42, %v1508
    %v1510 = vtanh.pop %v1509
    %v1511 = vmul.f32 %v1510, 0.5
    %v1512 = vadd.f32 %v1511, 0.5
    %v1513 = vsel %vm41, %v1510, %v1512
    %v1514 = vmul.f32 %v1513, %v1426
    %1516 = vrot.lane.b32.xlu0 %v1513, 64
    %v1517 = vpop.permute.xlu0 %1516
    %v1519 = vmul.f32 %v1513, %v1517
    %1521 = vrot.lane.b32.xlu0 %v1519, 32
    %v1522 = vpop.permute.xlu0 %1521
    %v1524 = vadd.f32 %v1514, %v1522
    %v1525 = vtanh.pop %v1524
    %1527 = vrot.lane.b32.xlu0 %v1525, 64
    %v1528 = vpop.permute.xlu0 %1527
    %v1530 = vmul.f32 %v1513, %v1528
    %1532 = vrot.lane.b32.xlu0 %v1530, 32
    %v1533 = vpop.permute.xlu0 %1532
    %v1534 = vsel %vm212, %v1533, 0
    %1536 = vmatprep.subr.mxu0 0.0
    %1537 = vmatpush1.msra.mxu0 %v900
    %1538 = vmatprep.subr.mxu0 0.0
    %1539 = vmatpush1.msra.mxu0 %v901
    %1540 = vmatprep.subr.mxu0 0.0
    %1541 = vmatpush1.msra.mxu0 %v902
    %1542 = vmatprep.subr.mxu0 0.0
    %1543 = vmatpush1.msra.mxu0 %v903
    %1544 = vmatprep.subr.mxu0 0.0
    %1545 = vmatpush1.msra.mxu0 0.0
    %1546 = vmatprep.subr.mxu0 0.0
    %1547 = vmatpush1.msra.mxu0 0.0
    %1548 = vmatprep.subr.mxu0 0.0
    %1549 = vmatpush1.msra.mxu0 0.0
    %1550 = vmatprep.subr.mxu0 0.0
    %1551 = vmatpush1.msra.mxu0 0.0
    %1552 = vmatprep.subr.mxu0 0.0
    %1553 = vmatpush1.msra.mxu0 0.0
    %1554 = vmatprep.subr.mxu0 0.0
    %1555 = vmatpush1.msra.mxu0 0.0
    %1556 = vmatprep.subr.mxu0 0.0
    %1557 = vmatpush1.msra.mxu0 0.0
    %1558 = vmatprep.subr.mxu0 0.0
    %1559 = vmatpush1.msra.mxu0 0.0
    %1560 = vmatprep.subr.mxu0 0.0
    %1561 = vmatpush1.msra.mxu0 0.0
    %1562 = vmatprep.subr.mxu0 0.0
    %1563 = vmatpush1.msra.mxu0 0.0
    %1564 = vmatprep.subr.mxu0 0.0
    %1565 = vmatpush1.msra.mxu0 0.0
    %1566 = vmatprep.subr.mxu0 0.0
    %1567 = vmatpush1.msra.mxu0 0.0
    %1568 = vmatprep.subr.mxu0 0.0
    %1569 = vmatpush1.msra.mxu0 0.0
    %1570 = vmatprep.subr.mxu0 0.0
    %1571 = vmatpush1.msra.mxu0 0.0
    %1572 = vmatprep.subr.mxu0 0.0
    %1573 = vmatpush1.msra.mxu0 0.0
    %1574 = vmatprep.subr.mxu0 0.0
    %1575 = vmatpush1.msra.mxu0 0.0
    %1576 = vmatprep.subr.mxu0 0.0
    %1577 = vmatpush1.msra.mxu0 0.0
    %1578 = vmatprep.subr.mxu0 0.0
    %1579 = vmatpush1.msra.mxu0 0.0
    %1580 = vmatprep.subr.mxu0 0.0
    %1581 = vmatpush1.msra.mxu0 0.0
    %1582 = vmatprep.subr.mxu0 0.0
    %1583 = vmatpush1.msra.mxu0 0.0
    %1584 = vmatprep.subr.mxu0 0.0
    %1585 = vmatpush1.msra.mxu0 0.0
    %1586 = vmatprep.subr.mxu0 0.0
    %1587 = vmatpush1.msra.mxu0 0.0
    %1588 = vmatprep.subr.mxu0 0.0
    %1589 = vmatpush1.msra.mxu0 0.0
    %1590 = vmatprep.subr.mxu0 0.0
    %1591 = vmatpush1.msra.mxu0 0.0
    %1592 = vmatprep.subr.mxu0 0.0
    %1593 = vmatpush1.msra.mxu0 0.0
    %1594 = vmatprep.subr.mxu0 0.0
    %1595 = vmatpush1.msra.mxu0 0.0
    %1596 = vmatprep.subr.mxu0 0.0
    %1597 = vmatpush1.msra.mxu0 0.0
    %1598 = vmatprep.subr.mxu0 0.0
    %1599 = vmatpush1.msra.mxu0 0.0
    %1600 = vmatprep.mubr.f32.mxu0 0.0
    %1601 = vmatmul.mubr.f32.gmra.mrb[0].mxu0 %v1534
    %v1602 = vpop.f32.mrb[0].mxu0
    %v1603 = vadd.f32 0.0, %v1602
    %v1604 = vpop.f32.mrb[0].mxu0
    %1605 = vdwg.mxu0
    %v1606 = vadd.f32 %v1011, %v1603
    %v1607 = vmul.f32 %v42, %v1606
    %v1608 = vtanh.pop %v1607
    %v1609 = vmul.f32 %v1608, 0.5
    %v1610 = vadd.f32 %v1609, 0.5
    %v1611 = vsel %vm41, %v1608, %v1610
    %v1612 = vmul.f32 %v1611, %v1524
    %1614 = vrot.lane.b32.xlu0 %v1611, 64
    %v1615 = vpop.permute.xlu0 %1614
    %v1617 = vmul.f32 %v1611, %v1615
    %1619 = vrot.lane.b32.xlu0 %v1617, 32
    %v1620 = vpop.permute.xlu0 %1619
    %v1622 = vadd.f32 %v1612, %v1620
    %v1623 = vtanh.pop %v1622
    %1625 = vrot.lane.b32.xlu0 %v1623, 64
    %v1626 = vpop.permute.xlu0 %1625
    %v1628 = vmul.f32 %v1611, %v1626
    %1630 = vrot.lane.b32.xlu0 %v1628, 32
    %v1631 = vpop.permute.xlu0 %1630
    %v1632 = vsel %vm212, %v1631, 0
    %1634 = vmatprep.subr.mxu0 0.0
    %1635 = vmatpush1.msra.mxu0 %v900
    %1636 = vmatprep.subr.mxu0 0.0
    %1637 = vmatpush1.msra.mxu0 %v901
    %1638 = vmatprep.subr.mxu0 0.0
    %1639 = vmatpush1.msra.mxu0 %v902
    %1640 = vmatprep.subr.mxu0 0.0
    %1641 = vmatpush1.msra.mxu0 %v903
    %1642 = vmatprep.subr.mxu0 0.0
    %1643 = vmatpush1.msra.mxu0 0.0
    %1644 = vmatprep.subr.mxu0 0.0
    %1645 = vmatpush1.msra.mxu0 0.0
    %1646 = vmatprep.subr.mxu0 0.0
    %1647 = vmatpush1.msra.mxu0 0.0
    %1648 = vmatprep.subr.mxu0 0.0
    %1649 = vmatpush1.msra.mxu0 0.0
    %1650 = vmatprep.subr.mxu0 0.0
    %1651 = vmatpush1.msra.mxu0 0.0
    %1652 = vmatprep.subr.mxu0 0.0
    %1653 = vmatpush1.msra.mxu0 0.0
    %1654 = vmatprep.subr.mxu0 0.0
    %1655 = vmatpush1.msra.mxu0 0.0
    %1656 = vmatprep.subr.mxu0 0.0
    %1657 = vmatpush1.msra.mxu0 0.0
    %1658 = vmatprep.subr.mxu0 0.0
    %1659 = vmatpush1.msra.mxu0 0.0
    %1660 = vmatprep.subr.mxu0 0.0
    %1661 = vmatpush1.msra.mxu0 0.0
    %1662 = vmatprep.subr.mxu0 0.0
    %1663 = vmatpush1.msra.mxu0 0.0
    %1664 = vmatprep.subr.mxu0 0.0
    %1665 = vmatpush1.msra.mxu0 0.0
    %1666 = vmatprep.subr.mxu0 0.0
    %1667 = vmatpush1.msra.mxu0 0.0
    %1668 = vmatprep.subr.mxu0 0.0
    %1669 = vmatpush1.msra.mxu0 0.0
    %1670 = vmatprep.subr.mxu0 0.0
    %1671 = vmatpush1.msra.mxu0 0.0
    %1672 = vmatprep.subr.mxu0 0.0
    %1673 = vmatpush1.msra.mxu0 0.0
    %1674 = vmatprep.subr.mxu0 0.0
    %1675 = vmatpush1.msra.mxu0 0.0
    %1676 = vmatprep.subr.mxu0 0.0
    %1677 = vmatpush1.msra.mxu0 0.0
    %1678 = vmatprep.subr.mxu0 0.0
    %1679 = vmatpush1.msra.mxu0 0.0
    %1680 = vmatprep.subr.mxu0 0.0
    %1681 = vmatpush1.msra.mxu0 0.0
    %1682 = vmatprep.subr.mxu0 0.0
    %1683 = vmatpush1.msra.mxu0 0.0
    %1684 = vmatprep.subr.mxu0 0.0
    %1685 = vmatpush1.msra.mxu0 0.0
    %1686 = vmatprep.subr.mxu0 0.0
    %1687 = vmatpush1.msra.mxu0 0.0
    %1688 = vmatprep.subr.mxu0 0.0
    %1689 = vmatpush1.msra.mxu0 0.0
    %1690 = vmatprep.subr.mxu0 0.0
    %1691 = vmatpush1.msra.mxu0 0.0
    %1692 = vmatprep.subr.mxu0 0.0
    %1693 = vmatpush1.msra.mxu0 0.0
    %1694 = vmatprep.subr.mxu0 0.0
    %1695 = vmatpush1.msra.mxu0 0.0
    %1696 = vmatprep.subr.mxu0 0.0
    %1697 = vmatpush1.msra.mxu0 0.0
    %1698 = vmatprep.mubr.f32.mxu0 0.0
    %1699 = vmatmul.mubr.f32.gmra.mrb[0].mxu0 %v1632
    %v1700 = vpop.f32.mrb[0].mxu0
    %v1701 = vadd.f32 0.0, %v1700
    %v1702 = vpop.f32.mrb[0].mxu0
    %1703 = vdwg.mxu0
    %v1704 = vadd.f32 %v1016, %v1701
    %v1705 = vmul.f32 %v42, %v1704
    %v1706 = vtanh.pop %v1705
    %v1707 = vmul.f32 %v1706, 0.5
    %v1708 = vadd.f32 %v1707, 0.5
    %v1709 = vsel %vm41, %v1706, %v1708
    %v1710 = vmul.f32 %v1709, %v1622
    %1712 = vrot.lane.b32.xlu0 %v1709, 64
    %v1713 = vpop.permute.xlu0 %1712
    %v1715 = vmul.f32 %v1709, %v1713
    %1717 = vrot.lane.b32.xlu0 %v1715, 32
    %v1718 = vpop.permute.xlu0 %1717
    %v1720 = vadd.f32 %v1710, %v1718
    %v1721 = vtanh.pop %v1720
    %1723 = vrot.lane.b32.xlu0 %v1721, 64
    %v1724 = vpop.permute.xlu0 %1723
    %v1726 = vmul.f32 %v1709, %v1724
    %1728 = vrot.lane.b32.xlu0 %v1138, 64
    %v1729 = vpop.permute.xlu0 %1728
    %1731 = vrot.lane.b32.xlu0 %v1236, 96
    %v1732 = vpop.permute.xlu0 %1731
    %1735 = vrot.lane.b32.xlu0 %v1530, 64
    %v1736 = vpop.permute.xlu0 %1735
    %1738 = vrot.lane.b32.xlu0 %v1628, 96
    %v1739 = vpop.permute.xlu0 %1738
    %v1741 = vsel %vm212, %v1043, %v1729
    %vm1742 = vcmask 523264
    %v1743 = vsel %vm1742, %v1741, %v1732
    %vm1744 = vcmask 785408
    %v1745 = vsel %vm1744, %v1743, %v1334
    %v1746 = vsel %vm212, %v1435, %v1736
    %v1747 = vsel %vm1742, %v1746, %v1739
    %v1748 = vsel %vm1744, %v1747, %v1726
    %v1749 = vld [vmem:[#allocation2 + $0x78] sm:$0xff]
    %v1750 = vld [vmem:[#allocation2 + $0x80] sm:$0xff]
    %v1751 = vld [vmem:[#allocation2 + $0x88] sm:$0xff]
    %v1752 = vld [vmem:[#allocation2 + $0x90] sm:$0xff]
    %v1753 = vld [vmem:[#allocation2 + $0x98] sm:$0xff]
    %v1754 = vld [vmem:[#allocation2 + $0xa0] sm:$0xff]
    %v1755 = vld [vmem:[#allocation2 + $0xa8] sm:$0xff]
    %v1756 = vld [vmem:[#allocation2 + $0xb0] sm:$0xff]
    %v1757 = vld [vmem:[#allocation2 + $0xb8] sm:$0xff]
    %v1758 = vld [vmem:[#allocation2 + $0xc0] sm:$0xff]
    %v1759 = vld [vmem:[#allocation2 + $0xc8] sm:$0xff]
    %v1760 = vld [vmem:[#allocation2 + $0xd0] sm:$0xff]
    %v1761 = vld [vmem:[#allocation2 + $0xd8] sm:$0xff]
    %v1762 = vld [vmem:[#allocation2 + $0xe0] sm:$0xff]
    %v1763 = vld [vmem:[#allocation2 + $0xe8] sm:$0xff]
    %v1764 = vld [vmem:[#allocation2 + $0xf0] sm:$0xff]
    %v1765 = vld [vmem:[#allocation2 + $0xf8] sm:$0xff]
    %v1766 = vld [vmem:[#allocation2 + $0x100] sm:$0xff]
    %v1767 = vld [vmem:[#allocation2 + $0x108] sm:$0xff]
    %v1768 = vld [vmem:[#allocation2 + $0x110] sm:$0xff]
    %v1769 = vld [vmem:[#allocation2 + $0x118] sm:$0xff]
    %v1770 = vld [vmem:[#allocation2 + $0x120] sm:$0xff]
    %v1771 = vld [vmem:[#allocation2 + $0x128] sm:$0xff]
    %v1772 = vld [vmem:[#allocation2 + $0x130] sm:$0xff]
    %v1773 = vld [vmem:[#allocation2 + $0x138] sm:$0xff]
    %v1774 = vld [vmem:[#allocation2 + $0x140] sm:$0xff]
    %v1775 = vld [vmem:[#allocation2 + $0x148] sm:$0xff]
    %v1776 = vld [vmem:[#allocation2 + $0x150] sm:$0xff]
    %v1777 = vld [vmem:[#allocation2 + $0x158] sm:$0xff]
    %v1778 = vld [vmem:[#allocation2 + $0x160] sm:$0xff]
    %v1779 = vld [vmem:[#allocation2 + $0x168] sm:$0xff]
    %v1780 = vld [vmem:[#allocation2 + $0x170] sm:$0xff]
    %v1781 = vld [vmem:[#allocation2 + $0x178] sm:$0xff]
    %vm1782 = vcmask 64512
    %v1784 = vsel %vm1782, %v36, 0
    %1786 = vmatprep.subr.mxu0 0.0
    %1787 = vmatpush1.msra.mxu0 %v1781
    %1788 = vmatprep.subr.mxu0 0.0
    %1789 = vmatpush1.msra.mxu0 0.0
    %1790 = vmatprep.subr.mxu0 0.0
    %1791 = vmatpush1.msra.mxu0 0.0
    %1792 = vmatprep.subr.mxu0 0.0
    %1793 = vmatpush1.msra.mxu0 0.0
    %1794 = vmatprep.subr.mxu0 0.0
    %1795 = vmatpush1.msra.mxu0 0.0
    %1796 = vmatprep.subr.mxu0 0.0
    %1797 = vmatpush1.msra.mxu0 0.0
    %1798 = vmatprep.subr.mxu0 0.0
    %1799 = vmatpush1.msra.mxu0 0.0
    %1800 = vmatprep.subr.mxu0 0.0
    %1801 = vmatpush1.msra.mxu0 0.0
    %1802 = vmatprep.subr.mxu0 0.0
    %1803 = vmatpush1.msra.mxu0 0.0
    %1804 = vmatprep.subr.mxu0 0.0
    %1805 = vmatpush1.msra.mxu0 0.0
    %1806 = vmatprep.subr.mxu0 0.0
    %1807 = vmatpush1.msra.mxu0 0.0
    %1808 = vmatprep.subr.mxu0 0.0
    %1809 = vmatpush1.msra.mxu0 0.0
    %1810 = vmatprep.subr.mxu0 0.0
    %1811 = vmatpush1.msra.mxu0 0.0
    %1812 = vmatprep.subr.mxu0 0.0
    %1813 = vmatpush1.msra.mxu0 0.0
    %1814 = vmatprep.subr.mxu0 0.0
    %1815 = vmatpush1.msra.mxu0 0.0
    %1816 = vmatprep.subr.mxu0 0.0
    %1817 = vmatpush1.msra.mxu0 0.0
    %1818 = vmatprep.subr.mxu0 0.0
    %1819 = vmatpush1.msra.mxu0 0.0
    %1820 = vmatprep.subr.mxu0 0.0
    %1821 = vmatpush1.msra.mxu0 0.0
    %1822 = vmatprep.subr.mxu0 0.0
    %1823 = vmatpush1.msra.mxu0 0.0
    %1824 = vmatprep.subr.mxu0 0.0
    %1825 = vmatpush1.msra.mxu0 0.0
    %1826 = vmatprep.subr.mxu0 0.0
    %1827 = vmatpush1.msra.mxu0 0.0
    %1828 = vmatprep.subr.mxu0 0.0
    %1829 = vmatpush1.msra.mxu0 0.0
    %1830 = vmatprep.subr.mxu0 0.0
    %1831 = vmatpush1.msra.mxu0 0.0
    %1832 = vmatprep.subr.mxu0 0.0
    %1833 = vmatpush1.msra.mxu0 0.0
    %1834 = vmatprep.subr.mxu0 0.0
    %1835 = vmatpush1.msra.mxu0 0.0
    %1836 = vmatprep.subr.mxu0 0.0
    %1837 = vmatpush1.msra.mxu0 0.0
    %1838 = vmatprep.subr.mxu0 0.0
    %1839 = vmatpush1.msra.mxu0 0.0
    %1840 = vmatprep.subr.mxu0 0.0
    %1841 = vmatpush1.msra.mxu0 0.0
    %1842 = vmatprep.subr.mxu0 0.0
    %1843 = vmatpush1.msra.mxu0 0.0
    %1844 = vmatprep.subr.mxu0 0.0
    %1845 = vmatpush1.msra.mxu0 0.0
    %1846 = vmatprep.subr.mxu0 0.0
    %1847 = vmatpush1.msra.mxu0 0.0
    %1848 = vmatprep.subr.mxu0 0.0
    %1849 = vmatpush1.msra.mxu0 0.0
    %1850 = vmatprep.mubr.f32.mxu0 0.0
    %1851 = vmatmul.mubr.f32.gmra.mrb[0].mxu0 %v1784
    %v1852 = vpop.f32.mrb[0].mxu0
    %v1853 = vadd.f32 0.0, %v1852
    %v1854 = vpop.f32.mrb[0].mxu0
    %1855 = vdwg.mxu0
    %1856 = vmatprep.subr.mxu0 0.0
    %1857 = vmatpush1.msra.mxu0 %v1749
    %1858 = vmatprep.subr.mxu0 0.0
    %1859 = vmatpush1.msra.mxu0 %v1750
    %1860 = vmatprep.subr.mxu0 0.0
    %1861 = vmatpush1.msra.mxu0 %v1751
    %1862 = vmatprep.subr.mxu0 0.0
    %1863 = vmatpush1.msra.mxu0 %v1752
    %1864 = vmatprep.subr.mxu0 0.0
    %1865 = vmatpush1.msra.mxu0 %v1753
    %1866 = vmatprep.subr.mxu0 0.0
    %1867 = vmatpush1.msra.mxu0 %v1754
    %1868 = vmatprep.subr.mxu0 0.0
    %1869 = vmatpush1.msra.mxu0 %v1755
    %1870 = vmatprep.subr.mxu0 0.0
    %1871 = vmatpush1.msra.mxu0 %v1756
    %1872 = vmatprep.subr.mxu0 0.0
    %1873 = vmatpush1.msra.mxu0 %v1757
    %1874 = vmatprep.subr.mxu0 0.0
    %1875 = vmatpush1.msra.mxu0 %v1758
    %1876 = vmatprep.subr.mxu0 0.0
    %1877 = vmatpush1.msra.mxu0 %v1759
    %1878 = vmatprep.subr.mxu0 0.0
    %1879 = vmatpush1.msra.mxu0 %v1760
    %1880 = vmatprep.subr.mxu0 0.0
    %1881 = vmatpush1.msra.mxu0 %v1761
    %1882 = vmatprep.subr.mxu0 0.0
    %1883 = vmatpush1.msra.mxu0 %v1762
    %1884 = vmatprep.subr.mxu0 0.0
    %1885 = vmatpush1.msra.mxu0 %v1763
    %1886 = vmatprep.subr.mxu0 0.0
    %1887 = vmatpush1.msra.mxu0 %v1764
    %1888 = vmatprep.subr.mxu0 0.0
    %1889 = vmatpush1.msra.mxu0 %v1765
    %1890 = vmatprep.subr.mxu0 0.0
    %1891 = vmatpush1.msra.mxu0 %v1766
    %1892 = vmatprep.subr.mxu0 0.0
    %1893 = vmatpush1.msra.mxu0 %v1767
    %1894 = vmatprep.subr.mxu0 0.0
    %1895 = vmatpush1.msra.mxu0 %v1768
    %1896 = vmatprep.subr.mxu0 0.0
    %1897 = vmatpush1.msra.mxu0 %v1769
    %1898 = vmatprep.subr.mxu0 0.0
    %1899 = vmatpush1.msra.mxu0 %v1770
    %1900 = vmatprep.subr.mxu0 0.0
    %1901 = vmatpush1.msra.mxu0 %v1771
    %1902 = vmatprep.subr.mxu0 0.0
    %1903 = vmatpush1.msra.mxu0 %v1772
    %1904 = vmatprep.subr.mxu0 0.0
    %1905 = vmatpush1.msra.mxu0 %v1773
    %1906 = vmatprep.subr.mxu0 0.0
    %1907 = vmatpush1.msra.mxu0 %v1774
    %1908 = vmatprep.subr.mxu0 0.0
    %1909 = vmatpush1.msra.mxu0 %v1775
    %1910 = vmatprep.subr.mxu0 0.0
    %1911 = vmatpush1.msra.mxu0 %v1776
    %1912 = vmatprep.subr.mxu0 0.0
    %1913 = vmatpush1.msra.mxu0 %v1777
    %1914 = vmatprep.subr.mxu0 0.0
    %1915 = vmatpush1.msra.mxu0 %v1778
    %1916 = vmatprep.subr.mxu0 0.0
    %1917 = vmatpush1.msra.mxu0 %v1779
    %1918 = vmatprep.subr.mxu0 0.0
    %1919 = vmatpush1.msra.mxu0 %v1780
    %1920 = vmatprep.mubr.f32.mxu0 %v1748
    %1921 = vmatmul.mubr.f32.gmra.mrb[0].mxu0 %v1745
    %v1922 = vpop.f32.mrb[0].mxu0
    %v1923 = vadd.f32 %v1853, %v1922
    %v1924 = vpop.f32.mrb[0].mxu0
    %1925 = vdwg.mxu0
    %v1926 = vld [vmem:[#allocation2 + $0x180] sm:$0x1]
    %v1927 = vlaneseq
    %v1928 = vshrl.u32 %v1927, 7
    %v1929 = vsub.s32 0, %v1928
    %v1930 = vrot.slane %v1926, %v1929
    %v1931 = vadd.f32 %v1923, %v1930
    %1932 = vst [vmem:[%s3] sm:$0xff] %v1931
    // Predicated region
    $region18: #{forward.1} parent=1 // pred_check
      _
    $region19: #{forward.1} parent=1 // pred_check_branch
      %1934 = sbr.rel (0) target = $region21
    $region20: #{forward.1} parent=1 // pred_region
      _
    $region21: #{forward.1} parent=1 // pred_fallthru
      _
    // Predicated region
    $region22: #{forward.1} parent=1 // pred_check
      _
    $region23: #{forward.1} parent=1 // pred_check_branch
      %1936 = sbr.rel (0) target = $region25
    $region24: #{forward.1} parent=1 // pred_region
      _
    $region25: #{forward.1} parent=1 // pred_fallthru
      _
    %1937 = vsyncpa [#allocation3], 1

</llo_original>
